<compile_context>
chip_gen: v5e
topology: v5e:2x2
jax: 0.10.0
libtpu: 0.0.40
codegen_flags: <defaults>
</compile_context>

<pallas_src>
import functools
import math

import numpy as np
import jax
import jax.numpy as jnp
from jax import lax
from jax.experimental import pallas as pl
from jax.experimental.pallas import tpu as pltpu


# ----------------------------- tiling helper -----------------------------

def _pick_tile(dim, preferred, align):
    """Largest power-of-two tile <= preferred (>= align) dividing dim, else full dim."""
    c = preferred
    while c >= align:
        if dim % c == 0:
            return c
        c //= 2
    return dim  # full dim (always legal: block == array extent)


# ----------------------------- tiled matmul (+bias/+residual/+gelu) -----------------------------

def _mm_kernel(*refs, activation, has_residual, k_steps, use_bf16):
    if k_steps == 1:
        if has_residual:
            a_ref, w_ref, bias_ref, res_ref, o_ref = refs
        else:
            a_ref, w_ref, bias_ref, o_ref = refs
            res_ref = None
        acc_ref = None
    else:
        if has_residual:
            a_ref, w_ref, bias_ref, res_ref, o_ref, acc_ref = refs
        else:
            a_ref, w_ref, bias_ref, o_ref, acc_ref = refs
            res_ref = None

    a = a_ref[...]
    w = w_ref[...]
    if use_bf16:
        a = a.astype(jnp.bfloat16)
        w = w.astype(jnp.bfloat16)
    part = jnp.dot(a, w, preferred_element_type=jnp.float32)

    def epilogue(acc):
        out = acc + bias_ref[...]
        if activation == "gelu":
            # TODO(synk): PyTorch nn.GELU default is exact-erf; tanh approximation used here.
            out = jax.nn.gelu(out, approximate=True)
        if res_ref is not None:
            out = out + res_ref[...]
        o_ref[...] = out.astype(o_ref.dtype)

    if k_steps == 1:
        epilogue(part)
    else:
        k = pl.program_id(2)

        @pl.when(k == 0)
        def _():
            acc_ref[...] = part

        @pl.when(jnp.logical_and(k > 0, k < k_steps - 1))
        def _():
            acc_ref[...] += part

        @pl.when(k == k_steps - 1)
        def _():
            epilogue(acc_ref[...] + part)


def matmul_bias(a, w, bias=None, *, activation=None, residual=None, use_bf16=True,
                tm=256, tn=512, tk=512):
    """out = act(a @ w + bias) + residual.

    `residual` may have fewer rows than `a` (must divide evenly); its rows are
    then reused periodically (used to fuse the broadcast pos-embedding add).
    """
    M, K = a.shape
    K2, N = w.shape
    assert K == K2
    if bias is None:
        bias = jnp.zeros((N,), jnp.float32)

    has_res = residual is not None
    res_rows = residual.shape[0] if has_res else M
    periodic_res = has_res and res_rows != M
    if periodic_res:
        assert M % res_rows == 0
        bm = _pick_tile(res_rows, tm, 8)      # divides both res_rows and M
    else:
        bm = _pick_tile(M, tm, 8)
    bn = _pick_tile(N, tn, 128)
    bk = _pick_tile(K, tk, 128)
    k_steps = K // bk
    nb_res = res_rows // bm

    kernel = functools.partial(_mm_kernel, activation=activation,
                               has_residual=has_res, k_steps=k_steps, use_bf16=use_bf16)
    in_specs = [
        pl.BlockSpec((bm, bk), lambda i, j, k: (i, k)),
        pl.BlockSpec((bk, bn), lambda i, j, k: (k, j)),
        pl.BlockSpec((1, bn), lambda i, j, k: (0, j)),
    ]
    args = [a, w, bias.reshape(1, N)]
    if has_res:
        if periodic_res:
            in_specs.append(pl.BlockSpec((bm, bn), lambda i, j, k: (i % nb_res, j)))
        else:
            in_specs.append(pl.BlockSpec((bm, bn), lambda i, j, k: (i, j)))
        args.append(residual)

    scratch = [] if k_steps == 1 else [pltpu.VMEM((bm, bn), jnp.float32)]

    return pl.pallas_call(
        kernel,
        out_shape=jax.ShapeDtypeStruct((M, N), jnp.float32),
        grid=(M // bm, N // bn, k_steps),
        in_specs=in_specs,
        out_specs=pl.BlockSpec((bm, bn), lambda i, j, k: (i, j)),
        scratch_shapes=scratch,
        compiler_params=pltpu.CompilerParams(
            dimension_semantics=("parallel", "parallel", "arbitrary")),
    )(*args)


# ----------------------------- fused LayerNorm + matmul (+bias/+gelu) -----------------------------

def _ln_mm_kernel(x_ref, g_ref, b_ref, w_ref, bias_ref, o_ref, *, activation):
    x = x_ref[...].astype(jnp.float32)
    mu = jnp.mean(x, axis=-1, keepdims=True)
    xc = x - mu
    var = jnp.mean(xc * xc, axis=-1, keepdims=True)
    inv = lax.rsqrt(var + 1e-5)  # PyTorch LayerNorm default eps
    xn = (xc * inv) * g_ref[...] + b_ref[...]
    acc = jnp.dot(xn.astype(jnp.bfloat16), w_ref[...].astype(jnp.bfloat16),
                  preferred_element_type=jnp.float32)
    out = acc + bias_ref[...]
    if activation == "gelu":
        # TODO(synk): PyTorch nn.GELU default is exact-erf; tanh approximation used here.
        out = jax.nn.gelu(out, approximate=True)
    o_ref[...] = out.astype(o_ref.dtype)


def ln_matmul(x, g, b, w, bias, activation=None, *, tm=256, tn=512):
    M, K = x.shape
    K2, N = w.shape
    assert K == K2
    bm = _pick_tile(M, tm, 8)
    bn = _pick_tile(N, tn, 128)
    kernel = functools.partial(_ln_mm_kernel, activation=activation)
    return pl.pallas_call(
        kernel,
        out_shape=jax.ShapeDtypeStruct((M, N), jnp.float32),
        grid=(M // bm, N // bn),
        in_specs=[
            pl.BlockSpec((bm, K), lambda i, j: (i, 0)),
            pl.BlockSpec((1, K), lambda i, j: (0, 0)),
            pl.BlockSpec((1, K), lambda i, j: (0, 0)),
            pl.BlockSpec((K, bn), lambda i, j: (0, j)),
            pl.BlockSpec((1, bn), lambda i, j: (0, j)),
        ],
        out_specs=pl.BlockSpec((bm, bn), lambda i, j: (i, j)),
        compiler_params=pltpu.CompilerParams(
            dimension_semantics=("parallel", "parallel")),
    )(x, g, b, w, bias.reshape(1, N))


# ----------------------------- attention (per-batch, heads handled in-kernel) -----------------------------

def _attn_kernel(qkv_ref, o_ref, *, n_heads, dh, scale):
    qkv = qkv_ref[0].astype(jnp.float32)     # (N, 3*D), head-major within each third
    D = n_heads * dh
    outs = []
    for h in range(n_heads):                 # static unroll over heads
        q = qkv[:, h * dh:(h + 1) * dh] * scale
        k = qkv[:, D + h * dh:D + (h + 1) * dh]
        v = qkv[:, 2 * D + h * dh:2 * D + (h + 1) * dh]
        # q @ k^T without materializing a transpose: contract the dh axis of both.
        s = lax.dot_general(q.astype(jnp.bfloat16), k.astype(jnp.bfloat16),
                            (((1,), (1,)), ((), ())),
                            preferred_element_type=jnp.float32)   # (N, N)
        s = s - jnp.max(s, axis=-1, keepdims=True)
        p = jnp.exp(s)
        p = p * pl.reciprocal(jnp.sum(p, axis=-1, keepdims=True), approx=True)
        outs.append(jnp.dot(p.astype(jnp.bfloat16), v.astype(jnp.bfloat16),
                            preferred_element_type=jnp.float32))  # (N, dh)
    o_ref[0] = jnp.concatenate(outs, axis=-1)                     # lane-dense (N, D) store


def attention(qkv, n_heads, scale):
    B, N, threeD = qkv.shape
    D = threeD // 3
    dh = D // n_heads
    kernel = functools.partial(_attn_kernel, n_heads=n_heads, dh=dh, scale=scale)
    return pl.pallas_call(
        kernel,
        out_shape=jax.ShapeDtypeStruct((B, N, D), jnp.float32),
        grid=(B,),
        in_specs=[pl.BlockSpec((1, N, threeD), lambda b: (b, 0, 0))],
        out_specs=pl.BlockSpec((1, N, D), lambda b: (b, 0, 0)),
        compiler_params=pltpu.CompilerParams(dimension_semantics=("parallel",)),
    )(qkv)


# ----------------------------- bilinear resize (batched, separable) -----------------------------

def bilinear_matrix(out_size, in_size):
    """Row-stochastic interpolation matrix matching F.interpolate(bilinear, align_corners=False)."""
    i = np.arange(out_size, dtype=np.float64)
    src = (i + 0.5) * (in_size / out_size) - 0.5
    src = np.clip(src, 0.0, in_size - 1)
    lo = np.floor(src).astype(np.int64)
    hi = np.minimum(lo + 1, in_size - 1)
    frac = (src - lo).astype(np.float32)
    Wm = np.zeros((out_size, in_size), dtype=np.float32)
    Wm[np.arange(out_size), lo] += 1.0 - frac
    Wm[np.arange(out_size), hi] += frac
    return jnp.asarray(Wm)


def bilinear_resize(logits, B, n_cls, Nh, Nw, H, W):
    """logits: (B*Nh*Nw, n_cls) token-major -> (B, n_cls, H, W) bilinear-upsampled masks."""
    Wh = bilinear_matrix(H, Nh)   # (H, Nh)
    Ww = bilinear_matrix(W, Nw)   # (W, Nw)
    # Height pass: contract Nh, lanes = B*Nw*n_cls (one batched MXU matmul).
    a1 = (logits.reshape(B, Nh, Nw, n_cls)
                .transpose(1, 0, 2, 3)
                .reshape(Nh, B * Nw * n_cls))
    r1 = matmul_bias(Wh, a1, use_bf16=False)                       # (H, B*Nw*n_cls)
    # Width pass: contract Nw, lanes = W; rows ordered (B, n_cls, H).
    a2 = (r1.reshape(H, B, Nw, n_cls)
             .transpose(1, 3, 0, 2)
             .reshape(B * n_cls * H, Nw))
    r2 = matmul_bias(a2, Ww.T, use_bf16=False)                     # (B*n_cls*H, W)
    return r2.reshape(B, n_cls, H, W)


# ----------------------------- model (glue) -----------------------------

def init_params(key, C, P, D, depth, mlp_dim, n_cls, n_tokens):
    keys = jax.random.split(key, 4 + depth)
    s = 0.02
    f32 = jnp.float32
    params = {
        "patch_w": jax.random.normal(keys[0], (C * P * P, D), f32) * s,
        "patch_b": jnp.zeros((D,), f32),
        "pos_emb": jax.random.normal(keys[1], (1, n_tokens, D), f32) * s,
        "ln_f_g": jnp.ones((1, D), f32),
        "ln_f_b": jnp.zeros((1, D), f32),
        "head_w": jax.random.normal(keys[2], (D, n_cls), f32) * s,
        "head_b": jnp.zeros((n_cls,), f32),
        "blocks": [],
    }
    for d in range(depth):
        bk = jax.random.split(keys[4 + d], 4)
        params["blocks"].append({
            "ln1_g": jnp.ones((1, D), f32), "ln1_b": jnp.zeros((1, D), f32),
            "qkv_w": jax.random.normal(bk[0], (D, 3 * D), f32) * s,
            "qkv_b": jnp.zeros((3 * D,), f32),
            "proj_w": jax.random.normal(bk[1], (D, D), f32) * s,
            "proj_b": jnp.zeros((D,), f32),
            "ln2_g": jnp.ones((1, D), f32), "ln2_b": jnp.zeros((1, D), f32),
            "fc1_w": jax.random.normal(bk[2], (D, mlp_dim), f32) * s,
            "fc1_b": jnp.zeros((mlp_dim,), f32),
            "fc2_w": jax.random.normal(bk[3], (mlp_dim, D), f32) * s,
            "fc2_b": jnp.zeros((D,), f32),
        })
    return params


def segmenter_forward(params, img, *, patch_size, n_heads):
    B, C, H, W = img.shape
    P = patch_size
    Nh, Nw = H // P, W // P
    N = Nh * Nw
    D = params["patch_w"].shape[1]

    # --- encoder: patch embedding (Conv2d(C, D, P, stride=P) as im2col + tiled MXU matmul);
    #     positional embedding fused into the matmul epilogue via a periodic residual ---
    patches = (img.reshape(B, C, Nh, P, Nw, P)
                  .transpose(0, 2, 4, 1, 3, 5)            # (B, Nh, Nw, C, P, P)
                  .reshape(B * N, C * P * P))
    pos = params["pos_emb"].reshape(N, D)                  # broadcast over batch in-kernel
    x = matmul_bias(patches, params["patch_w"], params["patch_b"], residual=pos)  # (B*N, D)

    dh = D // n_heads
    scale = 1.0 / math.sqrt(dh)

    # --- transformer blocks (pre-LN); LN fused into QKV/fc1, residual fused into proj/fc2 ---
    for blk in params["blocks"]:
        qkv = ln_matmul(x, blk["ln1_g"], blk["ln1_b"], blk["qkv_w"], blk["qkv_b"])   # (B*N, 3D)
        o = attention(qkv.reshape(B, N, 3 * D), n_heads, scale)                      # (B, N, D)
        x = matmul_bias(o.reshape(B * N, D), blk["proj_w"], blk["proj_b"], residual=x)
        h = ln_matmul(x, blk["ln2_g"], blk["ln2_b"], blk["fc1_w"], blk["fc1_b"],
                      activation="gelu")
        x = matmul_bias(h, blk["fc2_w"], blk["fc2_b"], residual=x)

    # --- decoder: final LN fused into the linear head; output padded to 128 lanes ---
    n_cls = params["head_b"].shape[0]
    n_pad = ((n_cls + 127) // 128) * 128
    head_w = jnp.pad(params["head_w"], ((0, 0), (0, n_pad - n_cls)))
    head_b = jnp.pad(params["head_b"], (0, n_pad - n_cls))
    logits = ln_matmul(x, params["ln_f_g"], params["ln_f_b"], head_w, head_b)[:, :n_cls]

    # --- F.interpolate(..., size=(H, W), mode='bilinear') as batched separable matmuls ---
    return bilinear_resize(logits, B, n_cls, Nh, Nw, H, W)       # (B, n_cls, H, W)


# ----------------------------- main -----------------------------

if __name__ == "__main__":
    B, C, H, W = 2, 3, 16, 16
    P, D, depth, heads, mlp_dim, n_cls = 4, 32, 2, 2, 64, 5
    N = (H // P) * (W // P)

    root = jax.random.PRNGKey(0)
    k_param, k_img = jax.random.split(root)
    params = init_params(k_param, C, P, D, depth, mlp_dim, n_cls, N)
    img = jax.random.normal(k_img, (B, C, H, W), jnp.float32)

    fwd = jax.jit(functools.partial(segmenter_forward, patch_size=P, n_heads=heads))
    out = fwd(params, img)
    jax.block_until_ready(out)

    assert out.shape == (B, n_cls, H, W), out.shape
    assert out.dtype == jnp.float32
    assert bool(jnp.all(jnp.isfinite(out)))
    print("KERNEL_OK")
</pallas_src>

<mosaic_0001>
module attributes {stable_mosaic.version = 11 : i64} {
  func.func @_mm_kernel(%arg0: i32, %arg1: i32, %arg2: i32, %arg3: memref<32x32xf32, #tpu.memory_space<vmem>>, %arg4: memref<32x32xf32, #tpu.memory_space<vmem>>, %arg5: memref<1x32xf32, #tpu.memory_space<vmem>>, %arg6: memref<32x32xf32, #tpu.memory_space<vmem>>, %arg7: memref<32x32xf32, #tpu.memory_space<vmem>>) attributes {dimension_semantics = [#tpu.dimension_semantics<parallel>, #tpu.dimension_semantics<parallel>, #tpu.dimension_semantics<arbitrary>], iteration_bounds = array<i64: 1, 1, 1>, scalar_prefetch = 0 : i64, scratch_operands = 0 : i64, tpu.core_type = #tpu.core_type<tc>, window_params = [{transform_indices = @transform_0, window_bounds = array<i64: 32, 32>}, {transform_indices = @transform_1, window_bounds = array<i64: 32, 32>}, {transform_indices = @transform_2, window_bounds = array<i64: 1, 32>}, {transform_indices = @transform_3, window_bounds = array<i64: 32, 32>}, {transform_indices = @transform_4, window_bounds = array<i64: 32, 32>}]} {
    %c0 = arith.constant 0 : index
    %c0_0 = arith.constant 0 : index
    %0 = vector.load %arg3[%c0, %c0_0] : memref<32x32xf32, #tpu.memory_space<vmem>>, vector<32x32xf32>
    %c0_1 = arith.constant 0 : index
    %c0_2 = arith.constant 0 : index
    %1 = vector.load %arg4[%c0_1, %c0_2] : memref<32x32xf32, #tpu.memory_space<vmem>>, vector<32x32xf32>
    %2 = arith.truncf %0 : vector<32x32xf32> to vector<32x32xbf16>
    %3 = arith.truncf %1 : vector<32x32xf32> to vector<32x32xbf16>
    %cst = arith.constant dense<0.000000e+00> : vector<32x32xf32>
    %4 = tpu.matmul %2, %3, %cst {dimension_numbers = #tpu.dot_dimension_numbers<[1], [0], [0], [1], [0, 0, 1, 1], [], []>} : vector<32x32xbf16>, vector<32x32xbf16>, vector<32x32xf32> -> vector<32x32xf32>
    %c0_3 = arith.constant 0 : index
    %c0_4 = arith.constant 0 : index
    %5 = vector.load %arg5[%c0_3, %c0_4] : memref<1x32xf32, #tpu.memory_space<vmem>>, vector<1x32xf32>
    %6 = vector.broadcast %5 : vector<1x32xf32> to vector<32x32xf32>
    %7 = arith.addf %4, %6 : vector<32x32xf32>
    %c0_5 = arith.constant 0 : index
    %c0_6 = arith.constant 0 : index
    %8 = vector.load %arg6[%c0_5, %c0_6] : memref<32x32xf32, #tpu.memory_space<vmem>>, vector<32x32xf32>
    %9 = arith.addf %7, %8 : vector<32x32xf32>
    %c0_7 = arith.constant 0 : index
    %c0_8 = arith.constant 0 : index
    %10 = vector.load %arg7[%c0_7, %c0_8] : memref<32x32xf32, #tpu.memory_space<vmem>>, vector<32x32xf32>
    tpu.vector_store %arg7[%c0_7, %c0_8], %9 {strides = array<i32>} : memref<32x32xf32, #tpu.memory_space<vmem>>, vector<32x32xf32>,
    return
  }
  func.func @transform_0(%arg0: i32, %arg1: i32, %arg2: i32) -> (i32, i32) {
    %c0_i32 = arith.constant 0 : i32
    return %arg0, %arg2 : i32, i32
  }
  func.func @transform_1(%arg0: i32, %arg1: i32, %arg2: i32) -> (i32, i32) {
    %c0_i32 = arith.constant 0 : i32
    return %arg2, %arg1 : i32, i32
  }
  func.func @transform_2(%arg0: i32, %arg1: i32, %arg2: i32) -> (i32, i32) {
    %c0_i32 = arith.constant 0 : i32
    %c0_i32_0 = arith.constant 0 : i32
    return %c0_i32, %arg1 : i32, i32
  }
  func.func @transform_3(%arg0: i32, %arg1: i32, %arg2: i32) -> (i32, i32) {
    %c0_i32 = arith.constant 0 : i32
    return %arg0, %arg1 : i32, i32
  }
  func.func @transform_4(%arg0: i32, %arg1: i32, %arg2: i32) -> (i32, i32) {
    %c0_i32 = arith.constant 0 : i32
    return %arg0, %arg1 : i32, i32
  }
}

module attributes {stable_mosaic.version = 11 : i64} {
  func.func @_mm_kernel(%arg0: i32, %arg1: i32, %arg2: i32, %arg3: memref<16x48xf32, #tpu.memory_space<vmem>>, %arg4: memref<48x32xf32, #tpu.memory_space<vmem>>, %arg5: memref<1x32xf32, #tpu.memory_space<vmem>>, %arg6: memref<16x32xf32, #tpu.memory_space<vmem>>, %arg7: memref<16x32xf32, #tpu.memory_space<vmem>>) attributes {dimension_semantics = [#tpu.dimension_semantics<parallel>, #tpu.dimension_semantics<parallel>, #tpu.dimension_semantics<arbitrary>], iteration_bounds = array<i64: 2, 1, 1>, scalar_prefetch = 0 : i64, scratch_operands = 0 : i64, tpu.core_type = #tpu.core_type<tc>, window_params = [{transform_indices = @transform_0, window_bounds = array<i64: 16, 48>}, {transform_indices = @transform_1, window_bounds = array<i64: 48, 32>}, {transform_indices = @transform_2, window_bounds = array<i64: 1, 32>}, {transform_indices = @transform_3, window_bounds = array<i64: 16, 32>}, {transform_indices = @transform_4, window_bounds = array<i64: 16, 32>}]} {
    %c0 = arith.constant 0 : index
    %c0_0 = arith.constant 0 : index
    %0 = vector.load %arg3[%c0, %c0_0] : memref<16x48xf32, #tpu.memory_space<vmem>>, vector<16x48xf32>
    %c0_1 = arith.constant 0 : index
    %c0_2 = arith.constant 0 : index
    %1 = vector.load %arg4[%c0_1, %c0_2] : memref<48x32xf32, #tpu.memory_space<vmem>>, vector<48x32xf32>
    %2 = arith.truncf %0 : vector<16x48xf32> to vector<16x48xbf16>
    %3 = arith.truncf %1 : vector<48x32xf32> to vector<48x32xbf16>
    %cst = arith.constant dense<0.000000e+00> : vector<16x32xf32>
    %4 = tpu.matmul %2, %3, %cst {dimension_numbers = #tpu.dot_dimension_numbers<[1], [0], [0], [1], [0, 0, 1, 1], [], []>} : vector<16x48xbf16>, vector<48x32xbf16>, vector<16x32xf32> -> vector<16x32xf32>
    %c0_3 = arith.constant 0 : index
    %c0_4 = arith.constant 0 : index
    %5 = vector.load %arg5[%c0_3, %c0_4] : memref<1x32xf32, #tpu.memory_space<vmem>>, vector<1x32xf32>
    %6 = vector.broadcast %5 : vector<1x32xf32> to vector<16x32xf32>
    %7 = arith.addf %4, %6 : vector<16x32xf32>
    %c0_5 = arith.constant 0 : index
    %c0_6 = arith.constant 0 : index
    %8 = vector.load %arg6[%c0_5, %c0_6] : memref<16x32xf32, #tpu.memory_space<vmem>>, vector<16x32xf32>
    %9 = arith.addf %7, %8 : vector<16x32xf32>
    %c0_7 = arith.constant 0 : index
    %c0_8 = arith.constant 0 : index
    %10 = vector.load %arg7[%c0_7, %c0_8] : memref<16x32xf32, #tpu.memory_space<vmem>>, vector<16x32xf32>
    tpu.vector_store %arg7[%c0_7, %c0_8], %9 {strides = array<i32>} : memref<16x32xf32, #tpu.memory_space<vmem>>, vector<16x32xf32>,
    return
  }
  func.func @transform_0(%arg0: i32, %arg1: i32, %arg2: i32) -> (i32, i32) {
    %c0_i32 = arith.constant 0 : i32
    return %arg0, %arg2 : i32, i32
  }
  func.func @transform_1(%arg0: i32, %arg1: i32, %arg2: i32) -> (i32, i32) {
    %c0_i32 = arith.constant 0 : i32
    return %arg2, %arg1 : i32, i32
  }
  func.func @transform_2(%arg0: i32, %arg1: i32, %arg2: i32) -> (i32, i32) {
    %c0_i32 = arith.constant 0 : i32
    %c0_i32_0 = arith.constant 0 : i32
    return %c0_i32, %arg1 : i32, i32
  }
  func.func @transform_3(%arg0: i32, %arg1: i32, %arg2: i32) -> (i32, i32) {
    %c1_i32 = arith.constant 1 : i32
    %c0_i32 = arith.constant 0 : i32
    %0 = arith.cmpi eq, %c1_i32, %c0_i32 : i32
    %c1_i32_0 = arith.constant 1 : i32
    %1 = arith.select %0, %c1_i32_0, %c1_i32 : i32
    %2 = arith.remsi %arg0, %1 : i32
    %c0_i32_1 = arith.constant 0 : i32
    %3 = arith.cmpi ne, %2, %c0_i32_1 : i32
    %c0_i32_2 = arith.constant 0 : i32
    %4 = arith.cmpi slt, %2, %c0_i32_2 : i32
    %c0_i32_3 = arith.constant 0 : i32
    %5 = arith.cmpi slt, %1, %c0_i32_3 : i32
    %6 = arith.xori %4, %5 : i1
    %7 = arith.andi %6, %3 : i1
    %8 = arith.addi %2, %1 : i32
    %9 = arith.select %7, %8, %2 : i32
    %c0_i32_4 = arith.constant 0 : i32
    return %9, %arg1 : i32, i32
  }
  func.func @transform_4(%arg0: i32, %arg1: i32, %arg2: i32) -> (i32, i32) {
    %c0_i32 = arith.constant 0 : i32
    return %arg0, %arg1 : i32, i32
  }
}

module attributes {stable_mosaic.version = 11 : i64} {
  func.func @_attn_kernel(%arg0: i32, %arg1: memref<1x16x96xf32, #tpu.memory_space<vmem>>, %arg2: memref<1x16x32xf32, #tpu.memory_space<vmem>>) attributes {dimension_semantics = [#tpu.dimension_semantics<parallel>], iteration_bounds = array<i64: 2>, scalar_prefetch = 0 : i64, scratch_operands = 0 : i64, tpu.core_type = #tpu.core_type<tc>, window_params = [{transform_indices = @transform_0, window_bounds = array<i64: 1, 16, 96>}, {transform_indices = @transform_1, window_bounds = array<i64: 1, 16, 32>}]} {
    %c0 = arith.constant 0 : index
    %c0_0 = arith.constant 0 : index
    %c0_1 = arith.constant 0 : index
    %0 = vector.load %arg1[%c0, %c0_0, %c0_1] : memref<1x16x96xf32, #tpu.memory_space<vmem>>, vector<1x16x96xf32>
    %1 = vector.shape_cast %0 : vector<1x16x96xf32> to vector<16x96xf32>
    %2 = vector.extract_strided_slice %1 {offsets = [0, 0], sizes = [16, 16], strides = [1, 1]} : vector<16x96xf32> to vector<16x16xf32>
    %cst = arith.constant 2.500000e-01 : f32
    %3 = vector.broadcast %cst : f32 to vector<16x16xf32>
    %4 = arith.mulf %2, %3 : vector<16x16xf32>
    %5 = vector.extract_strided_slice %1 {offsets = [0, 32], sizes = [16, 16], strides = [1, 1]} : vector<16x96xf32> to vector<16x16xf32>
    %6 = vector.extract_strided_slice %1 {offsets = [0, 64], sizes = [16, 16], strides = [1, 1]} : vector<16x96xf32> to vector<16x16xf32>
    %7 = arith.truncf %4 : vector<16x16xf32> to vector<16x16xbf16>
    %8 = arith.truncf %5 : vector<16x16xf32> to vector<16x16xbf16>
    %cst_2 = arith.constant dense<0.000000e+00> : vector<16x16xf32>
    %9 = tpu.matmul %7, %8, %cst_2 {dimension_numbers = #tpu.dot_dimension_numbers<[1], [1], [0], [0], [0, 0, 1, 0], [], []>} : vector<16x16xbf16>, vector<16x16xbf16>, vector<16x16xf32> -> vector<16x16xf32>
    %cst_3 = arith.constant dense<0xFF800000> : vector<16xf32>
    %10 = vector.multi_reduction <maximumf>, %9, %cst_3 [1] : vector<16x16xf32> to vector<16xf32>
    %11 = vector.shape_cast %10 : vector<16xf32> to vector<16x1xf32>
    %12 = vector.broadcast %11 : vector<16x1xf32> to vector<16x16xf32>
    %13 = arith.subf %9, %12 : vector<16x16xf32>
    %14 = math.exp %13 : vector<16x16xf32>
    %cst_4 = arith.constant dense<0.000000e+00> : vector<16xf32>
    %15 = vector.multi_reduction <add>, %14, %cst_4 [1] : vector<16x16xf32> to vector<16xf32>
    %16 = vector.shape_cast %15 : vector<16xf32> to vector<16x1xf32>
    %17 = tpu.reciprocal %16 {approx = true} : vector<16x1xf32> -> vector<16x1xf32>
    %18 = vector.broadcast %17 : vector<16x1xf32> to vector<16x16xf32>
    %19 = arith.mulf %14, %18 : vector<16x16xf32>
    %20 = arith.truncf %19 : vector<16x16xf32> to vector<16x16xbf16>
    %21 = arith.truncf %6 : vector<16x16xf32> to vector<16x16xbf16>
    %cst_5 = arith.constant dense<0.000000e+00> : vector<16x16xf32>
    %22 = tpu.matmul %20, %21, %cst_5 {dimension_numbers = #tpu.dot_dimension_numbers<[1], [0], [0], [1], [0, 0, 1, 1], [], []>} : vector<16x16xbf16>, vector<16x16xbf16>, vector<16x16xf32> -> vector<16x16xf32>
    %23 = vector.extract_strided_slice %1 {offsets = [0, 16], sizes = [16, 16], strides = [1, 1]} : vector<16x96xf32> to vector<16x16xf32>
    %cst_6 = arith.constant 2.500000e-01 : f32
    %24 = vector.broadcast %cst_6 : f32 to vector<16x16xf32>
    %25 = arith.mulf %23, %24 : vector<16x16xf32>
    %26 = vector.extract_strided_slice %1 {offsets = [0, 48], sizes = [16, 16], strides = [1, 1]} : vector<16x96xf32> to vector<16x16xf32>
    %27 = vector.extract_strided_slice %1 {offsets = [0, 80], sizes = [16, 16], strides = [1, 1]} : vector<16x96xf32> to vector<16x16xf32>
    %28 = arith.truncf %25 : vector<16x16xf32> to vector<16x16xbf16>
    %29 = arith.truncf %26 : vector<16x16xf32> to vector<16x16xbf16>
    %cst_7 = arith.constant dense<0.000000e+00> : vector<16x16xf32>
    %30 = tpu.matmul %28, %29, %cst_7 {dimension_numbers = #tpu.dot_dimension_numbers<[1], [1], [0], [0], [0, 0, 1, 0], [], []>} : vector<16x16xbf16>, vector<16x16xbf16>, vector<16x16xf32> -> vector<16x16xf32>
    %cst_8 = arith.constant dense<0xFF800000> : vector<16xf32>
    %31 = vector.multi_reduction <maximumf>, %30, %cst_8 [1] : vector<16x16xf32> to vector<16xf32>
    %32 = vector.shape_cast %31 : vector<16xf32> to vector<16x1xf32>
    %33 = vector.broadcast %32 : vector<16x1xf32> to vector<16x16xf32>
    %34 = arith.subf %30, %33 : vector<16x16xf32>
    %35 = math.exp %34 : vector<16x16xf32>
    %cst_9 = arith.constant dense<0.000000e+00> : vector<16xf32>
    %36 = vector.multi_reduction <add>, %35, %cst_9 [1] : vector<16x16xf32> to vector<16xf32>
    %37 = vector.shape_cast %36 : vector<16xf32> to vector<16x1xf32>
    %38 = tpu.reciprocal %37 {approx = true} : vector<16x1xf32> -> vector<16x1xf32>
    %39 = vector.broadcast %38 : vector<16x1xf32> to vector<16x16xf32>
    %40 = arith.mulf %35, %39 : vector<16x16xf32>
    %41 = arith.truncf %40 : vector<16x16xf32> to vector<16x16xbf16>
    %42 = arith.truncf %27 : vector<16x16xf32> to vector<16x16xbf16>
    %cst_10 = arith.constant dense<0.000000e+00> : vector<16x16xf32>
    %43 = tpu.matmul %41, %42, %cst_10 {dimension_numbers = #tpu.dot_dimension_numbers<[1], [0], [0], [1], [0, 0, 1, 1], [], []>} : vector<16x16xbf16>, vector<16x16xbf16>, vector<16x16xf32> -> vector<16x16xf32>
    %44 = tpu.concatenate %22, %43 in 1 : vector<16x16xf32>, vector<16x16xf32> -> vector<16x32xf32>
    %c0_11 = arith.constant 0 : index
    %c0_12 = arith.constant 0 : index
    %c0_13 = arith.constant 0 : index
    %45 = vector.load %arg2[%c0_11, %c0_12, %c0_13] : memref<1x16x32xf32, #tpu.memory_space<vmem>>, vector<1x16x32xf32>
    %46 = vector.shape_cast %45 : vector<1x16x32xf32> to vector<16x32xf32>
    %47 = vector.shape_cast %44 : vector<16x32xf32> to vector<1x16x32xf32>
    tpu.vector_store %arg2[%c0_11, %c0_12, %c0_13], %47 {strides = array<i32>} : memref<1x16x32xf32, #tpu.memory_space<vmem>>, vector<1x16x32xf32>,
    return
  }
  func.func @transform_0(%arg0: i32) -> (i32, i32, i32) {
    %c0_i32 = arith.constant 0 : i32
    %c0_i32_0 = arith.constant 0 : i32
    %c0_i32_1 = arith.constant 0 : i32
    return %arg0, %c0_i32, %c0_i32_0 : i32, i32, i32
  }
  func.func @transform_1(%arg0: i32) -> (i32, i32, i32) {
    %c0_i32 = arith.constant 0 : i32
    %c0_i32_0 = arith.constant 0 : i32
    %c0_i32_1 = arith.constant 0 : i32
    return %arg0, %c0_i32, %c0_i32_0 : i32, i32, i32
  }
}

module attributes {stable_mosaic.version = 11 : i64} {
  func.func @_ln_mm_kernel(%arg0: i32, %arg1: i32, %arg2: memref<32x32xf32, #tpu.memory_space<vmem>>, %arg3: memref<1x32xf32, #tpu.memory_space<vmem>>, %arg4: memref<1x32xf32, #tpu.memory_space<vmem>>, %arg5: memref<32x96xf32, #tpu.memory_space<vmem>>, %arg6: memref<1x96xf32, #tpu.memory_space<vmem>>, %arg7: memref<32x96xf32, #tpu.memory_space<vmem>>) attributes {dimension_semantics = [#tpu.dimension_semantics<parallel>, #tpu.dimension_semantics<parallel>], iteration_bounds = array<i64: 1, 1>, scalar_prefetch = 0 : i64, scratch_operands = 0 : i64, tpu.core_type = #tpu.core_type<tc>, window_params = [{transform_indices = @transform_0, window_bounds = array<i64: 32, 32>}, {pipeline_mode = #tpu.pipeline_mode<synchronous>, transform_indices = @transform_1, window_bounds = array<i64: 1, 32>}, {pipeline_mode = #tpu.pipeline_mode<synchronous>, transform_indices = @transform_2, window_bounds = array<i64: 1, 32>}, {transform_indices = @transform_3, window_bounds = array<i64: 32, 96>}, {transform_indices = @transform_4, window_bounds = array<i64: 1, 96>}, {transform_indices = @transform_5, window_bounds = array<i64: 32, 96>}]} {
    %c0 = arith.constant 0 : index
    %c0_0 = arith.constant 0 : index
    %0 = vector.load %arg2[%c0, %c0_0] : memref<32x32xf32, #tpu.memory_space<vmem>>, vector<32x32xf32>
    %cst = arith.constant dense<0.000000e+00> : vector<32xf32>
    %1 = vector.multi_reduction <add>, %0, %cst [1] : vector<32x32xf32> to vector<32xf32>
    %2 = vector.shape_cast %1 : vector<32xf32> to vector<32x1xf32>
    %cst_1 = arith.constant 3.200000e+01 : f32
    %3 = vector.broadcast %cst_1 : f32 to vector<32x1xf32>
    %4 = arith.divf %2, %3 : vector<32x1xf32>
    %5 = vector.broadcast %4 : vector<32x1xf32> to vector<32x32xf32>
    %6 = arith.subf %0, %5 : vector<32x32xf32>
    %7 = arith.mulf %6, %6 : vector<32x32xf32>
    %cst_2 = arith.constant dense<0.000000e+00> : vector<32xf32>
    %8 = vector.multi_reduction <add>, %7, %cst_2 [1] : vector<32x32xf32> to vector<32xf32>
    %9 = vector.shape_cast %8 : vector<32xf32> to vector<32x1xf32>
    %cst_3 = arith.constant 3.200000e+01 : f32
    %10 = vector.broadcast %cst_3 : f32 to vector<32x1xf32>
    %11 = arith.divf %9, %10 : vector<32x1xf32>
    %cst_4 = arith.constant 9.99999974E-6 : f32
    %12 = vector.broadcast %cst_4 : f32 to vector<32x1xf32>
    %13 = arith.addf %11, %12 : vector<32x1xf32>
    %14 = math.rsqrt %13 : vector<32x1xf32>
    %15 = vector.broadcast %14 : vector<32x1xf32> to vector<32x32xf32>
    %16 = arith.mulf %6, %15 : vector<32x32xf32>
    %c0_5 = arith.constant 0 : index
    %c0_6 = arith.constant 0 : index
    %17 = vector.load %arg3[%c0_5, %c0_6] : memref<1x32xf32, #tpu.memory_space<vmem>>, vector<1x32xf32>
    %18 = vector.broadcast %17 : vector<1x32xf32> to vector<32x32xf32>
    %19 = arith.mulf %16, %18 : vector<32x32xf32>
    %c0_7 = arith.constant 0 : index
    %c0_8 = arith.constant 0 : index
    %20 = vector.load %arg4[%c0_7, %c0_8] : memref<1x32xf32, #tpu.memory_space<vmem>>, vector<1x32xf32>
    %21 = vector.broadcast %20 : vector<1x32xf32> to vector<32x32xf32>
    %22 = arith.addf %19, %21 : vector<32x32xf32>
    %23 = arith.truncf %22 : vector<32x32xf32> to vector<32x32xbf16>
    %c0_9 = arith.constant 0 : index
    %c0_10 = arith.constant 0 : index
    %24 = vector.load %arg5[%c0_9, %c0_10] : memref<32x96xf32, #tpu.memory_space<vmem>>, vector<32x96xf32>
    %25 = arith.truncf %24 : vector<32x96xf32> to vector<32x96xbf16>
    %cst_11 = arith.constant dense<0.000000e+00> : vector<32x96xf32>
    %26 = tpu.matmul %23, %25, %cst_11 {dimension_numbers = #tpu.dot_dimension_numbers<[1], [0], [0], [1], [0, 0, 1, 1], [], []>} : vector<32x32xbf16>, vector<32x96xbf16>, vector<32x96xf32> -> vector<32x96xf32>
    %c0_12 = arith.constant 0 : index
    %c0_13 = arith.constant 0 : index
    %27 = vector.load %arg6[%c0_12, %c0_13] : memref<1x96xf32, #tpu.memory_space<vmem>>, vector<1x96xf32>
    %28 = vector.broadcast %27 : vector<1x96xf32> to vector<32x96xf32>
    %29 = arith.addf %26, %28 : vector<32x96xf32>
    %c0_14 = arith.constant 0 : index
    %c0_15 = arith.constant 0 : index
    %30 = vector.load %arg7[%c0_14, %c0_15] : memref<32x96xf32, #tpu.memory_space<vmem>>, vector<32x96xf32>
    tpu.vector_store %arg7[%c0_14, %c0_15], %29 {strides = array<i32>} : memref<32x96xf32, #tpu.memory_space<vmem>>, vector<32x96xf32>,
    return
  }
  func.func @transform_0(%arg0: i32, %arg1: i32) -> (i32, i32) {
    %c0_i32 = arith.constant 0 : i32
    %c0_i32_0 = arith.constant 0 : i32
    return %arg0, %c0_i32 : i32, i32
  }
  func.func @transform_1(%arg0: i32, %arg1: i32) -> (i32, i32) {
    %c0_i32 = arith.constant 0 : i32
    %c0_i32_0 = arith.constant 0 : i32
    %c0_i32_1 = arith.constant 0 : i32
    return %c0_i32, %c0_i32_0 : i32, i32
  }
  func.func @transform_2(%arg0: i32, %arg1: i32) -> (i32, i32) {
    %c0_i32 = arith.constant 0 : i32
    %c0_i32_0 = arith.constant 0 : i32
    %c0_i32_1 = arith.constant 0 : i32
    return %c0_i32, %c0_i32_0 : i32, i32
  }
  func.func @transform_3(%arg0: i32, %arg1: i32) -> (i32, i32) {
    %c0_i32 = arith.constant 0 : i32
    %c0_i32_0 = arith.constant 0 : i32
    return %c0_i32, %arg1 : i32, i32
  }
  func.func @transform_4(%arg0: i32, %arg1: i32) -> (i32, i32) {
    %c0_i32 = arith.constant 0 : i32
    %c0_i32_0 = arith.constant 0 : i32
    return %c0_i32, %arg1 : i32, i32
  }
  func.func @transform_5(%arg0: i32, %arg1: i32) -> (i32, i32) {
    %c0_i32 = arith.constant 0 : i32
    return %arg0, %arg1 : i32, i32
  }
}

module attributes {stable_mosaic.version = 11 : i64} {
  func.func @_ln_mm_kernel(%arg0: i32, %arg1: i32, %arg2: memref<32x32xf32, #tpu.memory_space<vmem>>, %arg3: memref<1x32xf32, #tpu.memory_space<vmem>>, %arg4: memref<1x32xf32, #tpu.memory_space<vmem>>, %arg5: memref<32x64xf32, #tpu.memory_space<vmem>>, %arg6: memref<1x64xf32, #tpu.memory_space<vmem>>, %arg7: memref<32x64xf32, #tpu.memory_space<vmem>>) attributes {dimension_semantics = [#tpu.dimension_semantics<parallel>, #tpu.dimension_semantics<parallel>], iteration_bounds = array<i64: 1, 1>, scalar_prefetch = 0 : i64, scratch_operands = 0 : i64, tpu.core_type = #tpu.core_type<tc>, window_params = [{transform_indices = @transform_0, window_bounds = array<i64: 32, 32>}, {pipeline_mode = #tpu.pipeline_mode<synchronous>, transform_indices = @transform_1, window_bounds = array<i64: 1, 32>}, {pipeline_mode = #tpu.pipeline_mode<synchronous>, transform_indices = @transform_2, window_bounds = array<i64: 1, 32>}, {transform_indices = @transform_3, window_bounds = array<i64: 32, 64>}, {transform_indices = @transform_4, window_bounds = array<i64: 1, 64>}, {transform_indices = @transform_5, window_bounds = array<i64: 32, 64>}]} {
    %c0 = arith.constant 0 : index
    %c0_0 = arith.constant 0 : index
    %0 = vector.load %arg2[%c0, %c0_0] : memref<32x32xf32, #tpu.memory_space<vmem>>, vector<32x32xf32>
    %cst = arith.constant dense<0.000000e+00> : vector<32xf32>
    %1 = vector.multi_reduction <add>, %0, %cst [1] : vector<32x32xf32> to vector<32xf32>
    %2 = vector.shape_cast %1 : vector<32xf32> to vector<32x1xf32>
    %cst_1 = arith.constant 3.200000e+01 : f32
    %3 = vector.broadcast %cst_1 : f32 to vector<32x1xf32>
    %4 = arith.divf %2, %3 : vector<32x1xf32>
    %5 = vector.broadcast %4 : vector<32x1xf32> to vector<32x32xf32>
    %6 = arith.subf %0, %5 : vector<32x32xf32>
    %7 = arith.mulf %6, %6 : vector<32x32xf32>
    %cst_2 = arith.constant dense<0.000000e+00> : vector<32xf32>
    %8 = vector.multi_reduction <add>, %7, %cst_2 [1] : vector<32x32xf32> to vector<32xf32>
    %9 = vector.shape_cast %8 : vector<32xf32> to vector<32x1xf32>
    %cst_3 = arith.constant 3.200000e+01 : f32
    %10 = vector.broadcast %cst_3 : f32 to vector<32x1xf32>
    %11 = arith.divf %9, %10 : vector<32x1xf32>
    %cst_4 = arith.constant 9.99999974E-6 : f32
    %12 = vector.broadcast %cst_4 : f32 to vector<32x1xf32>
    %13 = arith.addf %11, %12 : vector<32x1xf32>
    %14 = math.rsqrt %13 : vector<32x1xf32>
    %15 = vector.broadcast %14 : vector<32x1xf32> to vector<32x32xf32>
    %16 = arith.mulf %6, %15 : vector<32x32xf32>
    %c0_5 = arith.constant 0 : index
    %c0_6 = arith.constant 0 : index
    %17 = vector.load %arg3[%c0_5, %c0_6] : memref<1x32xf32, #tpu.memory_space<vmem>>, vector<1x32xf32>
    %18 = vector.broadcast %17 : vector<1x32xf32> to vector<32x32xf32>
    %19 = arith.mulf %16, %18 : vector<32x32xf32>
    %c0_7 = arith.constant 0 : index
    %c0_8 = arith.constant 0 : index
    %20 = vector.load %arg4[%c0_7, %c0_8] : memref<1x32xf32, #tpu.memory_space<vmem>>, vector<1x32xf32>
    %21 = vector.broadcast %20 : vector<1x32xf32> to vector<32x32xf32>
    %22 = arith.addf %19, %21 : vector<32x32xf32>
    %23 = arith.truncf %22 : vector<32x32xf32> to vector<32x32xbf16>
    %c0_9 = arith.constant 0 : index
    %c0_10 = arith.constant 0 : index
    %24 = vector.load %arg5[%c0_9, %c0_10] : memref<32x64xf32, #tpu.memory_space<vmem>>, vector<32x64xf32>
    %25 = arith.truncf %24 : vector<32x64xf32> to vector<32x64xbf16>
    %cst_11 = arith.constant dense<0.000000e+00> : vector<32x64xf32>
    %26 = tpu.matmul %23, %25, %cst_11 {dimension_numbers = #tpu.dot_dimension_numbers<[1], [0], [0], [1], [0, 0, 1, 1], [], []>} : vector<32x32xbf16>, vector<32x64xbf16>, vector<32x64xf32> -> vector<32x64xf32>
    %c0_12 = arith.constant 0 : index
    %c0_13 = arith.constant 0 : index
    %27 = vector.load %arg6[%c0_12, %c0_13] : memref<1x64xf32, #tpu.memory_space<vmem>>, vector<1x64xf32>
    %28 = vector.broadcast %27 : vector<1x64xf32> to vector<32x64xf32>
    %29 = arith.addf %26, %28 : vector<32x64xf32>
    %30 = arith.mulf %29, %29 : vector<32x64xf32>
    %31 = arith.mulf %29, %30 : vector<32x64xf32>
    %cst_14 = arith.constant 4.471500e-02 : f32
    %32 = vector.broadcast %cst_14 : f32 to vector<32x64xf32>
    %33 = arith.mulf %32, %31 : vector<32x64xf32>
    %34 = arith.addf %29, %33 : vector<32x64xf32>
    %cst_15 = arith.constant 0.797884583 : f32
    %35 = vector.broadcast %cst_15 : f32 to vector<32x64xf32>
    %36 = arith.mulf %35, %34 : vector<32x64xf32>
    %37 = math.tanh %36 : vector<32x64xf32>
    %cst_16 = arith.constant 1.000000e+00 : f32
    %38 = vector.broadcast %cst_16 : f32 to vector<32x64xf32>
    %39 = arith.addf %38, %37 : vector<32x64xf32>
    %cst_17 = arith.constant 5.000000e-01 : f32
    %40 = vector.broadcast %cst_17 : f32 to vector<32x64xf32>
    %41 = arith.mulf %40, %39 : vector<32x64xf32>
    %42 = arith.mulf %29, %41 : vector<32x64xf32>
    %c0_18 = arith.constant 0 : index
    %c0_19 = arith.constant 0 : index
    %43 = vector.load %arg7[%c0_18, %c0_19] : memref<32x64xf32, #tpu.memory_space<vmem>>, vector<32x64xf32>
    tpu.vector_store %arg7[%c0_18, %c0_19], %42 {strides = array<i32>} : memref<32x64xf32, #tpu.memory_space<vmem>>, vector<32x64xf32>,
    return
  }
  func.func @transform_0(%arg0: i32, %arg1: i32) -> (i32, i32) {
    %c0_i32 = arith.constant 0 : i32
    %c0_i32_0 = arith.constant 0 : i32
    return %arg0, %c0_i32 : i32, i32
  }
  func.func @transform_1(%arg0: i32, %arg1: i32) -> (i32, i32) {
    %c0_i32 = arith.constant 0 : i32
    %c0_i32_0 = arith.constant 0 : i32
    %c0_i32_1 = arith.constant 0 : i32
    return %c0_i32, %c0_i32_0 : i32, i32
  }
  func.func @transform_2(%arg0: i32, %arg1: i32) -> (i32, i32) {
    %c0_i32 = arith.constant 0 : i32
    %c0_i32_0 = arith.constant 0 : i32
    %c0_i32_1 = arith.constant 0 : i32
    return %c0_i32, %c0_i32_0 : i32, i32
  }
  func.func @transform_3(%arg0: i32, %arg1: i32) -> (i32, i32) {
    %c0_i32 = arith.constant 0 : i32
    %c0_i32_0 = arith.constant 0 : i32
    return %c0_i32, %arg1 : i32, i32
  }
  func.func @transform_4(%arg0: i32, %arg1: i32) -> (i32, i32) {
    %c0_i32 = arith.constant 0 : i32
    %c0_i32_0 = arith.constant 0 : i32
    return %c0_i32, %arg1 : i32, i32
  }
  func.func @transform_5(%arg0: i32, %arg1: i32) -> (i32, i32) {
    %c0_i32 = arith.constant 0 : i32
    return %arg0, %arg1 : i32, i32
  }
}

module attributes {stable_mosaic.version = 11 : i64} {
  func.func @_mm_kernel(%arg0: i32, %arg1: i32, %arg2: i32, %arg3: memref<32x64xf32, #tpu.memory_space<vmem>>, %arg4: memref<64x32xf32, #tpu.memory_space<vmem>>, %arg5: memref<1x32xf32, #tpu.memory_space<vmem>>, %arg6: memref<32x32xf32, #tpu.memory_space<vmem>>, %arg7: memref<32x32xf32, #tpu.memory_space<vmem>>) attributes {dimension_semantics = [#tpu.dimension_semantics<parallel>, #tpu.dimension_semantics<parallel>, #tpu.dimension_semantics<arbitrary>], iteration_bounds = array<i64: 1, 1, 1>, scalar_prefetch = 0 : i64, scratch_operands = 0 : i64, tpu.core_type = #tpu.core_type<tc>, window_params = [{transform_indices = @transform_0, window_bounds = array<i64: 32, 64>}, {transform_indices = @transform_1, window_bounds = array<i64: 64, 32>}, {transform_indices = @transform_2, window_bounds = array<i64: 1, 32>}, {transform_indices = @transform_3, window_bounds = array<i64: 32, 32>}, {transform_indices = @transform_4, window_bounds = array<i64: 32, 32>}]} {
    %c0 = arith.constant 0 : index
    %c0_0 = arith.constant 0 : index
    %0 = vector.load %arg3[%c0, %c0_0] : memref<32x64xf32, #tpu.memory_space<vmem>>, vector<32x64xf32>
    %c0_1 = arith.constant 0 : index
    %c0_2 = arith.constant 0 : index
    %1 = vector.load %arg4[%c0_1, %c0_2] : memref<64x32xf32, #tpu.memory_space<vmem>>, vector<64x32xf32>
    %2 = arith.truncf %0 : vector<32x64xf32> to vector<32x64xbf16>
    %3 = arith.truncf %1 : vector<64x32xf32> to vector<64x32xbf16>
    %cst = arith.constant dense<0.000000e+00> : vector<32x32xf32>
    %4 = tpu.matmul %2, %3, %cst {dimension_numbers = #tpu.dot_dimension_numbers<[1], [0], [0], [1], [0, 0, 1, 1], [], []>} : vector<32x64xbf16>, vector<64x32xbf16>, vector<32x32xf32> -> vector<32x32xf32>
    %c0_3 = arith.constant 0 : index
    %c0_4 = arith.constant 0 : index
    %5 = vector.load %arg5[%c0_3, %c0_4] : memref<1x32xf32, #tpu.memory_space<vmem>>, vector<1x32xf32>
    %6 = vector.broadcast %5 : vector<1x32xf32> to vector<32x32xf32>
    %7 = arith.addf %4, %6 : vector<32x32xf32>
    %c0_5 = arith.constant 0 : index
    %c0_6 = arith.constant 0 : index
    %8 = vector.load %arg6[%c0_5, %c0_6] : memref<32x32xf32, #tpu.memory_space<vmem>>, vector<32x32xf32>
    %9 = arith.addf %7, %8 : vector<32x32xf32>
    %c0_7 = arith.constant 0 : index
    %c0_8 = arith.constant 0 : index
    %10 = vector.load %arg7[%c0_7, %c0_8] : memref<32x32xf32, #tpu.memory_space<vmem>>, vector<32x32xf32>
    tpu.vector_store %arg7[%c0_7, %c0_8], %9 {strides = array<i32>} : memref<32x32xf32, #tpu.memory_space<vmem>>, vector<32x32xf32>,
    return
  }
  func.func @transform_0(%arg0: i32, %arg1: i32, %arg2: i32) -> (i32, i32) {
    %c0_i32 = arith.constant 0 : i32
    return %arg0, %arg2 : i32, i32
  }
  func.func @transform_1(%arg0: i32, %arg1: i32, %arg2: i32) -> (i32, i32) {
    %c0_i32 = arith.constant 0 : i32
    return %arg2, %arg1 : i32, i32
  }
  func.func @transform_2(%arg0: i32, %arg1: i32, %arg2: i32) -> (i32, i32) {
    %c0_i32 = arith.constant 0 : i32
    %c0_i32_0 = arith.constant 0 : i32
    return %c0_i32, %arg1 : i32, i32
  }
  func.func @transform_3(%arg0: i32, %arg1: i32, %arg2: i32) -> (i32, i32) {
    %c0_i32 = arith.constant 0 : i32
    return %arg0, %arg1 : i32, i32
  }
  func.func @transform_4(%arg0: i32, %arg1: i32, %arg2: i32) -> (i32, i32) {
    %c0_i32 = arith.constant 0 : i32
    return %arg0, %arg1 : i32, i32
  }
}

module attributes {stable_mosaic.version = 11 : i64} {
  func.func @_ln_mm_kernel(%arg0: i32, %arg1: i32, %arg2: memref<32x32xf32, #tpu.memory_space<vmem>>, %arg3: memref<1x32xf32, #tpu.memory_space<vmem>>, %arg4: memref<1x32xf32, #tpu.memory_space<vmem>>, %arg5: memref<32x128xf32, #tpu.memory_space<vmem>>, %arg6: memref<1x128xf32, #tpu.memory_space<vmem>>, %arg7: memref<32x128xf32, #tpu.memory_space<vmem>>) attributes {dimension_semantics = [#tpu.dimension_semantics<parallel>, #tpu.dimension_semantics<parallel>], iteration_bounds = array<i64: 1, 1>, scalar_prefetch = 0 : i64, scratch_operands = 0 : i64, tpu.core_type = #tpu.core_type<tc>, window_params = [{transform_indices = @transform_0, window_bounds = array<i64: 32, 32>}, {pipeline_mode = #tpu.pipeline_mode<synchronous>, transform_indices = @transform_1, window_bounds = array<i64: 1, 32>}, {pipeline_mode = #tpu.pipeline_mode<synchronous>, transform_indices = @transform_2, window_bounds = array<i64: 1, 32>}, {transform_indices = @transform_3, window_bounds = array<i64: 32, 128>}, {transform_indices = @transform_4, window_bounds = array<i64: 1, 128>}, {transform_indices = @transform_5, window_bounds = array<i64: 32, 128>}]} {
    %c0 = arith.constant 0 : index
    %c0_0 = arith.constant 0 : index
    %0 = vector.load %arg2[%c0, %c0_0] : memref<32x32xf32, #tpu.memory_space<vmem>>, vector<32x32xf32>
    %cst = arith.constant dense<0.000000e+00> : vector<32xf32>
    %1 = vector.multi_reduction <add>, %0, %cst [1] : vector<32x32xf32> to vector<32xf32>
    %2 = vector.shape_cast %1 : vector<32xf32> to vector<32x1xf32>
    %cst_1 = arith.constant 3.200000e+01 : f32
    %3 = vector.broadcast %cst_1 : f32 to vector<32x1xf32>
    %4 = arith.divf %2, %3 : vector<32x1xf32>
    %5 = vector.broadcast %4 : vector<32x1xf32> to vector<32x32xf32>
    %6 = arith.subf %0, %5 : vector<32x32xf32>
    %7 = arith.mulf %6, %6 : vector<32x32xf32>
    %cst_2 = arith.constant dense<0.000000e+00> : vector<32xf32>
    %8 = vector.multi_reduction <add>, %7, %cst_2 [1] : vector<32x32xf32> to vector<32xf32>
    %9 = vector.shape_cast %8 : vector<32xf32> to vector<32x1xf32>
    %cst_3 = arith.constant 3.200000e+01 : f32
    %10 = vector.broadcast %cst_3 : f32 to vector<32x1xf32>
    %11 = arith.divf %9, %10 : vector<32x1xf32>
    %cst_4 = arith.constant 9.99999974E-6 : f32
    %12 = vector.broadcast %cst_4 : f32 to vector<32x1xf32>
    %13 = arith.addf %11, %12 : vector<32x1xf32>
    %14 = math.rsqrt %13 : vector<32x1xf32>
    %15 = vector.broadcast %14 : vector<32x1xf32> to vector<32x32xf32>
    %16 = arith.mulf %6, %15 : vector<32x32xf32>
    %c0_5 = arith.constant 0 : index
    %c0_6 = arith.constant 0 : index
    %17 = vector.load %arg3[%c0_5, %c0_6] : memref<1x32xf32, #tpu.memory_space<vmem>>, vector<1x32xf32>
    %18 = vector.broadcast %17 : vector<1x32xf32> to vector<32x32xf32>
    %19 = arith.mulf %16, %18 : vector<32x32xf32>
    %c0_7 = arith.constant 0 : index
    %c0_8 = arith.constant 0 : index
    %20 = vector.load %arg4[%c0_7, %c0_8] : memref<1x32xf32, #tpu.memory_space<vmem>>, vector<1x32xf32>
    %21 = vector.broadcast %20 : vector<1x32xf32> to vector<32x32xf32>
    %22 = arith.addf %19, %21 : vector<32x32xf32>
    %23 = arith.truncf %22 : vector<32x32xf32> to vector<32x32xbf16>
    %c0_9 = arith.constant 0 : index
    %c0_10 = arith.constant 0 : index
    %24 = vector.load %arg5[%c0_9, %c0_10] : memref<32x128xf32, #tpu.memory_space<vmem>>, vector<32x128xf32>
    %25 = arith.truncf %24 : vector<32x128xf32> to vector<32x128xbf16>
    %cst_11 = arith.constant dense<0.000000e+00> : vector<32x128xf32>
    %26 = tpu.matmul %23, %25, %cst_11 {dimension_numbers = #tpu.dot_dimension_numbers<[1], [0], [0], [1], [0, 0, 1, 1], [], []>} : vector<32x32xbf16>, vector<32x128xbf16>, vector<32x128xf32> -> vector<32x128xf32>
    %c0_12 = arith.constant 0 : index
    %c0_13 = arith.constant 0 : index
    %27 = vector.load %arg6[%c0_12, %c0_13] : memref<1x128xf32, #tpu.memory_space<vmem>>, vector<1x128xf32>
    %28 = vector.broadcast %27 : vector<1x128xf32> to vector<32x128xf32>
    %29 = arith.addf %26, %28 : vector<32x128xf32>
    %c0_14 = arith.constant 0 : index
    %c0_15 = arith.constant 0 : index
    %30 = vector.load %arg7[%c0_14, %c0_15] : memref<32x128xf32, #tpu.memory_space<vmem>>, vector<32x128xf32>
    tpu.vector_store %arg7[%c0_14, %c0_15], %29 {strides = array<i32>} : memref<32x128xf32, #tpu.memory_space<vmem>>, vector<32x128xf32>,
    return
  }
  func.func @transform_0(%arg0: i32, %arg1: i32) -> (i32, i32) {
    %c0_i32 = arith.constant 0 : i32
    %c0_i32_0 = arith.constant 0 : i32
    return %arg0, %c0_i32 : i32, i32
  }
  func.func @transform_1(%arg0: i32, %arg1: i32) -> (i32, i32) {
    %c0_i32 = arith.constant 0 : i32
    %c0_i32_0 = arith.constant 0 : i32
    %c0_i32_1 = arith.constant 0 : i32
    return %c0_i32, %c0_i32_0 : i32, i32
  }
  func.func @transform_2(%arg0: i32, %arg1: i32) -> (i32, i32) {
    %c0_i32 = arith.constant 0 : i32
    %c0_i32_0 = arith.constant 0 : i32
    %c0_i32_1 = arith.constant 0 : i32
    return %c0_i32, %c0_i32_0 : i32, i32
  }
  func.func @transform_3(%arg0: i32, %arg1: i32) -> (i32, i32) {
    %c0_i32 = arith.constant 0 : i32
    %c0_i32_0 = arith.constant 0 : i32
    return %c0_i32, %arg1 : i32, i32
  }
  func.func @transform_4(%arg0: i32, %arg1: i32) -> (i32, i32) {
    %c0_i32 = arith.constant 0 : i32
    %c0_i32_0 = arith.constant 0 : i32
    return %c0_i32, %arg1 : i32, i32
  }
  func.func @transform_5(%arg0: i32, %arg1: i32) -> (i32, i32) {
    %c0_i32 = arith.constant 0 : i32
    return %arg0, %arg1 : i32, i32
  }
}

module attributes {stable_mosaic.version = 11 : i64} {
  func.func @_mm_kernel(%arg0: i32, %arg1: i32, %arg2: i32, %arg3: memref<16x4xf32, #tpu.memory_space<vmem>>, %arg4: memref<4x40xf32, #tpu.memory_space<vmem>>, %arg5: memref<1x40xf32, #tpu.memory_space<vmem>>, %arg6: memref<16x40xf32, #tpu.memory_space<vmem>>) attributes {dimension_semantics = [#tpu.dimension_semantics<parallel>, #tpu.dimension_semantics<parallel>, #tpu.dimension_semantics<arbitrary>], iteration_bounds = array<i64: 1, 1, 1>, scalar_prefetch = 0 : i64, scratch_operands = 0 : i64, tpu.core_type = #tpu.core_type<tc>, window_params = [{transform_indices = @transform_0, window_bounds = array<i64: 16, 4>}, {transform_indices = @transform_1, window_bounds = array<i64: 4, 40>}, {transform_indices = @transform_2, window_bounds = array<i64: 1, 40>}, {transform_indices = @transform_3, window_bounds = array<i64: 16, 40>}]} {
    %c0 = arith.constant 0 : index
    %c0_0 = arith.constant 0 : index
    %0 = vector.load %arg3[%c0, %c0_0] : memref<16x4xf32, #tpu.memory_space<vmem>>, vector<16x4xf32>
    %c0_1 = arith.constant 0 : index
    %c0_2 = arith.constant 0 : index
    %1 = vector.load %arg4[%c0_1, %c0_2] : memref<4x40xf32, #tpu.memory_space<vmem>>, vector<4x40xf32>
    %cst = arith.constant dense<0.000000e+00> : vector<16x40xf32>
    %2 = tpu.matmul %0, %1, %cst {dimension_numbers = #tpu.dot_dimension_numbers<[1], [0], [0], [1], [0, 0, 1, 1], [], []>} : vector<16x4xf32>, vector<4x40xf32>, vector<16x40xf32> -> vector<16x40xf32>
    %c0_3 = arith.constant 0 : index
    %c0_4 = arith.constant 0 : index
    %3 = vector.load %arg5[%c0_3, %c0_4] : memref<1x40xf32, #tpu.memory_space<vmem>>, vector<1x40xf32>
    %4 = vector.broadcast %3 : vector<1x40xf32> to vector<16x40xf32>
    %5 = arith.addf %2, %4 : vector<16x40xf32>
    %c0_5 = arith.constant 0 : index
    %c0_6 = arith.constant 0 : index
    %6 = vector.load %arg6[%c0_5, %c0_6] : memref<16x40xf32, #tpu.memory_space<vmem>>, vector<16x40xf32>
    tpu.vector_store %arg6[%c0_5, %c0_6], %5 {strides = array<i32>} : memref<16x40xf32, #tpu.memory_space<vmem>>, vector<16x40xf32>,
    return
  }
  func.func @transform_0(%arg0: i32, %arg1: i32, %arg2: i32) -> (i32, i32) {
    %c0_i32 = arith.constant 0 : i32
    return %arg0, %arg2 : i32, i32
  }
  func.func @transform_1(%arg0: i32, %arg1: i32, %arg2: i32) -> (i32, i32) {
    %c0_i32 = arith.constant 0 : i32
    return %arg2, %arg1 : i32, i32
  }
  func.func @transform_2(%arg0: i32, %arg1: i32, %arg2: i32) -> (i32, i32) {
    %c0_i32 = arith.constant 0 : i32
    %c0_i32_0 = arith.constant 0 : i32
    return %c0_i32, %arg1 : i32, i32
  }
  func.func @transform_3(%arg0: i32, %arg1: i32, %arg2: i32) -> (i32, i32) {
    %c0_i32 = arith.constant 0 : i32
    return %arg0, %arg1 : i32, i32
  }
}

module attributes {stable_mosaic.version = 11 : i64} {
  func.func @_mm_kernel(%arg0: i32, %arg1: i32, %arg2: i32, %arg3: memref<32x4xf32, #tpu.memory_space<vmem>>, %arg4: memref<4x16xf32, #tpu.memory_space<vmem>>, %arg5: memref<1x16xf32, #tpu.memory_space<vmem>>, %arg6: memref<32x16xf32, #tpu.memory_space<vmem>>) attributes {dimension_semantics = [#tpu.dimension_semantics<parallel>, #tpu.dimension_semantics<parallel>, #tpu.dimension_semantics<arbitrary>], iteration_bounds = array<i64: 5, 1, 1>, scalar_prefetch = 0 : i64, scratch_operands = 0 : i64, tpu.core_type = #tpu.core_type<tc>, window_params = [{transform_indices = @transform_0, window_bounds = array<i64: 32, 4>}, {transform_indices = @transform_1, window_bounds = array<i64: 4, 16>}, {transform_indices = @transform_2, window_bounds = array<i64: 1, 16>}, {transform_indices = @transform_3, window_bounds = array<i64: 32, 16>}]} {
    %c0 = arith.constant 0 : index
    %c0_0 = arith.constant 0 : index
    %0 = vector.load %arg3[%c0, %c0_0] : memref<32x4xf32, #tpu.memory_space<vmem>>, vector<32x4xf32>
    %c0_1 = arith.constant 0 : index
    %c0_2 = arith.constant 0 : index
    %1 = vector.load %arg4[%c0_1, %c0_2] : memref<4x16xf32, #tpu.memory_space<vmem>>, vector<4x16xf32>
    %cst = arith.constant dense<0.000000e+00> : vector<32x16xf32>
    %2 = tpu.matmul %0, %1, %cst {dimension_numbers = #tpu.dot_dimension_numbers<[1], [0], [0], [1], [0, 0, 1, 1], [], []>} : vector<32x4xf32>, vector<4x16xf32>, vector<32x16xf32> -> vector<32x16xf32>
    %c0_3 = arith.constant 0 : index
    %c0_4 = arith.constant 0 : index
    %3 = vector.load %arg5[%c0_3, %c0_4] : memref<1x16xf32, #tpu.memory_space<vmem>>, vector<1x16xf32>
    %4 = vector.broadcast %3 : vector<1x16xf32> to vector<32x16xf32>
    %5 = arith.addf %2, %4 : vector<32x16xf32>
    %c0_5 = arith.constant 0 : index
    %c0_6 = arith.constant 0 : index
    %6 = vector.load %arg6[%c0_5, %c0_6] : memref<32x16xf32, #tpu.memory_space<vmem>>, vector<32x16xf32>
    tpu.vector_store %arg6[%c0_5, %c0_6], %5 {strides = array<i32>} : memref<32x16xf32, #tpu.memory_space<vmem>>, vector<32x16xf32>,
    return
  }
  func.func @transform_0(%arg0: i32, %arg1: i32, %arg2: i32) -> (i32, i32) {
    %c0_i32 = arith.constant 0 : i32
    return %arg0, %arg2 : i32, i32
  }
  func.func @transform_1(%arg0: i32, %arg1: i32, %arg2: i32) -> (i32, i32) {
    %c0_i32 = arith.constant 0 : i32
    return %arg2, %arg1 : i32, i32
  }
  func.func @transform_2(%arg0: i32, %arg1: i32, %arg2: i32) -> (i32, i32) {
    %c0_i32 = arith.constant 0 : i32
    %c0_i32_0 = arith.constant 0 : i32
    return %c0_i32, %arg1 : i32, i32
  }
  func.func @transform_3(%arg0: i32, %arg1: i32, %arg2: i32) -> (i32, i32) {
    %c0_i32 = arith.constant 0 : i32
    return %arg0, %arg1 : i32, i32
  }
}

</mosaic_0001>

<llo_original>
// kernel: segmenter_forward.14
$region0: #{segmenter_forward.14}
  #allocation0 [shape = 'u32[]', space=smem, size = 0x4, offset = 0x4, fixed_abs, tag = 'smem constant byte address 0x4 - core index']
  #allocation1 [shape = 'u32[72,128]{1,0:T(1,128)}', space=vmem, size = 0x9000, scoped, tag = 'internal scratch']
  %s0 = inlined_call_operand.vmem [shape: f32[32,48], index: 0, kind: input, shape index: {}]
  %s1 = inlined_call_operand.vmem [shape: f32[48,32], index: 1, kind: input, shape index: {}]
  %s2 = inlined_call_operand.vmem [shape: f32[1,32], index: 2, kind: input, shape index: {}]
  %s3 = inlined_call_operand.vmem [shape: f32[16,32], index: 3, kind: input, shape index: {}]
  %s4 = inlined_call_operand.vmem [shape: f32[32,32], index: 4, kind: output, shape index: {}]
  %s5 = sld [smem:[#allocation0]]
  $region49: #{segmenter_forward.14} parent=0
    _
  %s7 = ssub.s32 1, %s5
  %s8 = scalar_select 0, %s7, %s5
  loop: start=0, step=1, limit=4
  $region2: #{segmenter_forward.14} parent=0 // loop_pre_header
    _
  $region3: #{segmenter_forward.14} parent=0 // loop_header
    %s10 = sphi 0, %s14
    %p11 = scmp.ge.s32.totalorder %s10, 4
    %s17 = sphi 0, %s36
    %s18 = sphi 0, %s32
    %s19 = sphi 0, %s28
    %s20 = sphi 0, %s17
    %s21 = sphi 0, %s18
    %s22 = sphi 0, %s19
    %s23 = sphi 0, %s20
    %s24 = sphi 0, %s21
    %s25 = sphi 0, %s22
    %s41 = sphi 0, %s43
    %s44 = sphi 0, %s41
    %s45 = sphi 0, %s44
    %s61 = sphi 0, %s45
    %s69 = sphi 0, %s71
    %s72 = sphi 0, %s69
    %s73 = sphi 0, %s72
    %s89 = sphi 0, %s73
    %s95 = sphi 0, %s97
    %s98 = sphi 0, %s95
    %s99 = sphi 0, %s98
    %s115 = sphi 0, %s99
    %s121 = sphi 0, %s123
    %s124 = sphi 0, %s121
    %s125 = sphi 0, %s124
    %s141 = sphi 0, %s125
    %s149 = sphi 0, %s151
    %s152 = sphi 0, %s149
    %s153 = sphi 0, %s152
    %s169 = sphi 0, %s153
  $region4: #{segmenter_forward.14} parent=0 // loop_header_branch
    %13 = sbr.rel (%p11) target = $region8
  $region5: #{segmenter_forward.14} parent=0 // loop_body
    %s15 = ssub.s32 %s10, 1
    %s16 = ssub.s32 %s10, 2
    %s26 = sadd.s32 1, %s19
    %p27 = scmp.ge.s32.totalorder %s26, 1
    %s28 = scalar_select %p27, 0, %s26
    %s29 = sadd.s32 1, %s18
    %s30 = scalar_select %p27, %s29, %s18
    %p31 = scmp.ge.s32.totalorder %s30, 1
    %s32 = scalar_select %p31, 0, %s30
    %s33 = sadd.s32 1, %s17
    %s34 = scalar_select %p31, %s33, %s17
    %p35 = scmp.ge.s32.totalorder %s34, 2
    %s36 = scalar_select %p35, 0, %s34
    %s37 = ssub.s32 %s17, %s36
    %s38 = ssub.s32 %s19, %s28
    %s39 = sor.u32 %s37, %s38
    %p40 = scmp.eq.s32.totalorder %s39, 0
    %s42 = sadd.s32 %s41, 1
    %s43 = scalar_select %p40, %s41, %s42
    %p46 = pneg %p40
    %p47 = scmp.eq.s32.totalorder %s10, 1
    %p48 = por %p46, %p47
    %p49 = scmp.ne.s32.totalorder %s41, %s44
    %p50 = scmp.eq.s32.totalorder %s10, 0
    %p51 = por %p49, %p50
    %p52 = scmp.ne.s32.totalorder %s41, %s44
    %p53 = scmp.eq.s32.totalorder %s15, 1
    %p54 = por %p52, %p53
    %p55 = scmp.ne.s32.totalorder %s44, %s45
    %p56 = scmp.eq.s32.totalorder %s15, 0
    %p57 = por %p55, %p56
    %p58 = scmp.ne.s32.totalorder %s44, %s45
    %p59 = scmp.eq.s32.totalorder %s16, 1
    %p60 = por %p58, %p59
    %p62 = scmp.ne.s32.totalorder %s45, %s61
    %p63 = scmp.eq.s32.totalorder %s16, 0
    %p64 = por %p62, %p63
    %s65 = ssub.s32 %s19, %s28
    %s66 = ssub.s32 %s18, %s32
    %s67 = sor.u32 %s65, %s66
    %p68 = scmp.eq.s32.totalorder %s67, 0
    %s70 = sadd.s32 %s69, 1
    %s71 = scalar_select %p68, %s69, %s70
    %p74 = pneg %p68
    %p75 = scmp.eq.s32.totalorder %s10, 1
    %p76 = por %p74, %p75
    %p77 = scmp.ne.s32.totalorder %s69, %s72
    %p78 = scmp.eq.s32.totalorder %s10, 0
    %p79 = por %p77, %p78
    %p80 = scmp.ne.s32.totalorder %s69, %s72
    %p81 = scmp.eq.s32.totalorder %s15, 1
    %p82 = por %p80, %p81
    %p83 = scmp.ne.s32.totalorder %s72, %s73
    %p84 = scmp.eq.s32.totalorder %s15, 0
    %p85 = por %p83, %p84
    %p86 = scmp.ne.s32.totalorder %s72, %s73
    %p87 = scmp.eq.s32.totalorder %s16, 1
    %p88 = por %p86, %p87
    %p90 = scmp.ne.s32.totalorder %s73, %s89
    %p91 = scmp.eq.s32.totalorder %s16, 0
    %p92 = por %p90, %p91
    %s93 = ssub.s32 %s18, %s32
    %p94 = scmp.eq.s32.totalorder %s93, 0
    %s96 = sadd.s32 %s95, 1
    %s97 = scalar_select %p94, %s95, %s96
    %p100 = pneg %p94
    %p101 = scmp.eq.s32.totalorder %s10, 1
    %p102 = por %p100, %p101
    %p103 = scmp.ne.s32.totalorder %s95, %s98
    %p104 = scmp.eq.s32.totalorder %s10, 0
    %p105 = por %p103, %p104
    %p106 = scmp.ne.s32.totalorder %s95, %s98
    %p107 = scmp.eq.s32.totalorder %s15, 1
    %p108 = por %p106, %p107
    %p109 = scmp.ne.s32.totalorder %s98, %s99
    %p110 = scmp.eq.s32.totalorder %s15, 0
    %p111 = por %p109, %p110
    %p112 = scmp.ne.s32.totalorder %s98, %s99
    %p113 = scmp.eq.s32.totalorder %s16, 1
    %p114 = por %p112, %p113
    %p116 = scmp.ne.s32.totalorder %s99, %s115
    %p117 = scmp.eq.s32.totalorder %s16, 0
    %p118 = por %p116, %p117
    %s119 = ssub.s32 %s18, %s32
    %p120 = scmp.eq.s32.totalorder %s119, 0
    %s122 = sadd.s32 %s121, 1
    %s123 = scalar_select %p120, %s121, %s122
    %p126 = pneg %p120
    %p127 = scmp.eq.s32.totalorder %s10, 1
    %p128 = por %p126, %p127
    %p129 = scmp.ne.s32.totalorder %s121, %s124
    %p130 = scmp.eq.s32.totalorder %s10, 0
    %p131 = por %p129, %p130
    %p132 = scmp.ne.s32.totalorder %s121, %s124
    %p133 = scmp.eq.s32.totalorder %s15, 1
    %p134 = por %p132, %p133
    %p135 = scmp.ne.s32.totalorder %s124, %s125
    %p136 = scmp.eq.s32.totalorder %s15, 0
    %p137 = por %p135, %p136
    %p138 = scmp.ne.s32.totalorder %s124, %s125
    %p139 = scmp.eq.s32.totalorder %s16, 1
    %p140 = por %p138, %p139
    %p142 = scmp.ne.s32.totalorder %s125, %s141
    %p143 = scmp.eq.s32.totalorder %s16, 0
    %p144 = por %p142, %p143
    %s145 = ssub.s32 %s17, %s36
    %s146 = ssub.s32 %s18, %s32
    %s147 = sor.u32 %s145, %s146
    %p148 = scmp.eq.s32.totalorder %s147, 0
    %s150 = sadd.s32 %s149, 1
    %s151 = scalar_select %p148, %s149, %s150
    %p154 = pneg %p148
    %p155 = scmp.eq.s32.totalorder %s10, 1
    %p156 = por %p154, %p155
    %p157 = scmp.ne.s32.totalorder %s149, %s152
    %p158 = scmp.eq.s32.totalorder %s10, 0
    %p159 = por %p157, %p158
    %p160 = scmp.ne.s32.totalorder %s149, %s152
    %p161 = scmp.eq.s32.totalorder %s15, 1
    %p162 = por %p160, %p161
    %p163 = scmp.ne.s32.totalorder %s152, %s153
    %p164 = scmp.eq.s32.totalorder %s15, 0
    %p165 = por %p163, %p164
    %p166 = scmp.ne.s32.totalorder %s152, %s153
    %p167 = scmp.eq.s32.totalorder %s16, 1
    %p168 = por %p166, %p167
    %p170 = scmp.ne.s32.totalorder %s153, %s169
    %p171 = scmp.eq.s32.totalorder %s16, 0
    %p172 = por %p170, %p171
    %p173 = scmp.le.s32.totalorder 1, %s10
    %p174 = scmp.lt.s32.totalorder %s10, 3
    %p175 = pnand %p173, %p174
    %p176 = pneg %p175
    // Predicated region
    $region9: #{segmenter_forward.14} parent=5 // pred_check
      _
    $region10: #{segmenter_forward.14} parent=5 // pred_check_branch
      %178 = sbr.rel (%p175) target = $region12
    $region11: #{segmenter_forward.14} parent=5 // pred_region
      %s179 = ssub.s32 %s10, 1
      // Predicated region
      $region13: #{segmenter_forward.14} parent=11 // pred_check
        %p180 = pneg %p85
      $region14: #{segmenter_forward.14} parent=11 // pred_check_branch
        %182 = sbr.rel (%p180) target = $region16
      $region15: #{segmenter_forward.14} parent=11 // pred_region
        %s183 = smul.u32 6, %s22
        %p184 = scmp.lt.s32.totalorder %s183, 5
        %s185 = scalar_select %p184, %s183, 5
        %p186 = scmp.lt.s32.totalorder %s21, 0
        %s187 = scalar_select %p186, %s21, 0
        %s188 = sadd.s32 %s187, %s185
        %s189 = smul.addr %s188, 8
        %s190 = scalar_lea.vmem %s1, %s189
        %s191 = smul.u32 6, %s22
      $region16: #{segmenter_forward.14} parent=11 // pred_fallthru
        _
      // Predicated region
      $region17: #{segmenter_forward.14} parent=11 // pred_check
        %p192 = pneg %p111
      $region18: #{segmenter_forward.14} parent=11 // pred_check_branch
        %194 = sbr.rel (%p192) target = $region20
      $region19: #{segmenter_forward.14} parent=11 // pred_region
        %p195 = scmp.lt.s32.totalorder %s21, 0
        %s196 = scalar_select %p195, %s21, 0
        %s197 = scalar_lea.vmem %s2, %s196
      $region20: #{segmenter_forward.14} parent=11 // pred_fallthru
        _
      // Predicated region
      $region21: #{segmenter_forward.14} parent=11 // pred_check
        %p198 = pneg %p137
      $region22: #{segmenter_forward.14} parent=11 // pred_check_branch
        %200 = sbr.rel (%p198) target = $region24
      $region23: #{segmenter_forward.14} parent=11 // pred_region
        %p201 = scmp.lt.s32.totalorder %s21, 0
        %s202 = scalar_select %p201, %s21, 0
        %s203 = smul.addr %s202, 8
        %s204 = scalar_lea.vmem %s3, %s203
      $region24: #{segmenter_forward.14} parent=11 // pred_fallthru
        _
    $region12: #{segmenter_forward.14} parent=5 // pred_fallthru
      _
    %p205 = scmp.lt.s32.totalorder %s10, 2
    // Predicated region
    $region25: #{segmenter_forward.14} parent=5 // pred_check
      %p206 = pneg %p205
    $region26: #{segmenter_forward.14} parent=5 // pred_check_branch
      %208 = sbr.rel (%p206) target = $region28
    $region27: #{segmenter_forward.14} parent=5 // pred_region
      // Predicated region
      $region29: #{segmenter_forward.14} parent=27 // pred_check
        %p209 = pneg %p51
      $region30: #{segmenter_forward.14} parent=27 // pred_check_branch
        %211 = sbr.rel (%p209) target = $region32
      $region31: #{segmenter_forward.14} parent=27 // pred_region
        %s212 = smul.u32 2, %s17
        %p213 = scmp.lt.s32.totalorder %s212, 3
        %s214 = scalar_select %p213, %s212, 3
        %p215 = scmp.lt.s32.totalorder %s19, 0
        %s216 = scalar_select %p215, %s19, 0
        %s217 = sadd.s32 %s216, %s214
        %s218 = smul.addr %s217, 8
        %s219 = scalar_lea.vmem %s0, %s218
        %s220 = smul.u32 2, %s17
      $region32: #{segmenter_forward.14} parent=27 // pred_fallthru
        _
    $region28: #{segmenter_forward.14} parent=5 // pred_fallthru
      _
    %p221 = scmp.le.s32.totalorder 1, %s10
    %p222 = scmp.lt.s32.totalorder %s10, 3
    %p223 = pnand %p221, %p222
    %p224 = pneg %p223
    // Predicated region
    $region33: #{segmenter_forward.14} parent=5 // pred_check
      _
    $region34: #{segmenter_forward.14} parent=5 // pred_check_branch
      %226 = sbr.rel (%p223) target = $region36
    $region35: #{segmenter_forward.14} parent=5 // pred_region
      %s227 = ssub.s32 %s10, 1
      %s228 = smul.u32 2, %s20
      %p229 = scmp.lt.s32.totalorder %s228, 3
      %s230 = scalar_select %p229, %s228, 3
      %p231 = scmp.lt.s32.totalorder %s22, 0
      %s232 = scalar_select %p231, %s22, 0
      %s233 = sadd.s32 %s232, %s230
      %s234 = smul.addr %s233, 8
      %s235 = scalar_lea.vmem %s0, %s234
      %p236 = pneg %p57
      %p237 = pneg %p54
      %s238 = smul.u32 6, %s22
      %p239 = scmp.lt.s32.totalorder %s238, 5
      %s240 = scalar_select %p239, %s238, 5
      %p241 = scmp.lt.s32.totalorder %s21, 0
      %s242 = scalar_select %p241, %s21, 0
      %s243 = sadd.s32 %s242, %s240
      %s244 = smul.addr %s243, 8
      %s245 = scalar_lea.vmem %s1, %s244
      %p246 = pneg %p85
      %p247 = pneg %p82
      %p248 = scmp.lt.s32.totalorder %s21, 0
      %s249 = scalar_select %p248, %s21, 0
      %s250 = scalar_lea.vmem %s2, %s249
      %p251 = pneg %p111
      %p252 = pneg %p108
      %p253 = scmp.lt.s32.totalorder %s21, 0
      %s254 = scalar_select %p253, %s21, 0
      %s255 = smul.addr %s254, 8
      %s256 = scalar_lea.vmem %s3, %s255
      %p257 = pneg %p137
      %p258 = pneg %p134
      %p259 = pneg %p165
      %p260 = pneg %p162
      %s261 = smul.u32 2, %s20
      %p262 = scmp.lt.s32.totalorder %s261, 3
      %s263 = scalar_select %p262, %s261, 3
      %p264 = scmp.lt.s32.totalorder %s21, 0
      %s265 = scalar_select %p264, %s21, 0
      %s266 = sadd.s32 %s265, %s263
      %s267 = smul.addr %s266, 8
      %s268 = scalar_lea.vmem %s4, %s267
      %s269 = smul.u32 2, %s20
      %p270 = scmp.lt.s32.totalorder %s269, 3
      %s271 = scalar_select %p270, %s269, 3
      %p272 = scmp.lt.s32.totalorder %s22, 0
      %s273 = scalar_select %p272, %s22, 0
      %s274 = sadd.s32 %s273, %s271
      %s275 = smul.addr %s274, 8
      %s276 = scalar_lea.vmem %s0, %s275
      %s277 = smul.u32 2, %s20
      %s278 = smul.u32 6, %s22
      %p279 = scmp.lt.s32.totalorder %s278, 5
      %s280 = scalar_select %p279, %s278, 5
      %p281 = scmp.lt.s32.totalorder %s21, 0
      %s282 = scalar_select %p281, %s21, 0
      %s283 = sadd.s32 %s282, %s280
      %s284 = smul.addr %s283, 8
      %s285 = scalar_lea.vmem %s1, %s284
      %s286 = smul.u32 6, %s22
      %p287 = scmp.lt.s32.totalorder %s21, 0
      %s288 = scalar_select %p287, %s21, 0
      %s289 = scalar_lea.vmem %s2, %s288
      %p290 = scmp.lt.s32.totalorder %s21, 0
      %s291 = scalar_select %p290, %s21, 0
      %s292 = smul.addr %s291, 8
      %s293 = scalar_lea.vmem %s3, %s292
      %s294 = smul.u32 2, %s20
      %p295 = scmp.lt.s32.totalorder %s294, 3
      %s296 = scalar_select %p295, %s294, 3
      %p297 = scmp.lt.s32.totalorder %s21, 0
      %s298 = scalar_select %p297, %s21, 0
      %s299 = sadd.s32 %s298, %s296
      %s300 = smul.addr %s299, 8
      %s301 = scalar_lea.vmem %s4, %s300
      %s302 = smul.u32 2, %s20
      %v304 = vld [vmem:[%s276] sm:$0xff]
      %v305 = vld [vmem:[%s276 + $0x8] sm:$0xff]
      %v306 = vld [vmem:[%s285] sm:$0xff]
      %v307 = vld [vmem:[%s285 + $0x8] sm:$0xff]
      %v308 = vld [vmem:[%s285 + $0x10] sm:$0xff]
      %v309 = vld [vmem:[%s285 + $0x18] sm:$0xff]
      %v310 = vld [vmem:[%s285 + $0x20] sm:$0xff]
      %v311 = vld [vmem:[%s285 + $0x28] sm:$0xff]
      %v312 = vpack.c.bf16 %v305, %v304
      %v313 = vpack.c.bf16 %v307, %v306
      %v314 = vpack.c.bf16 %v309, %v308
      %v315 = vpack.c.bf16 %v311, %v310
      %v316 = vld [vmem:[%s289] sm:$0x1]
      %v318 = vperm.slane %v316, 0
      %vm320 = vcmask 392192
      %v322 = vsel %vm320, %v312, 0
      %324 = vmatpush.bf16.msra.mxu0 0
      %325 = vmatpush.bf16.msra.mxu0 0
      %326 = vmatpush.bf16.msra.mxu0 0
      %327 = vmatpush.bf16.msra.mxu0 0
      %328 = vmatpush.bf16.msra.mxu0 0
      %329 = vmatpush.bf16.msra.mxu0 %v315
      %330 = vmatpush.bf16.msra.mxu0 %v314
      %331 = vmatpush.bf16.msra.mxu0 %v313
      %332 = vmatmul.bf16.gmra.mxu0 %v322
      %v333 = vpop.f32.mrf.mxu0
      %v334 = vadd.f32 %v318, %v333
      %v335 = vpop.f32.mrf.mxu0
      %v336 = vadd.f32 %v318, %v335
      %337 = vdwg.mxu0
      %v338 = vld [vmem:[%s293] sm:$0xff]
      %v339 = vld [vmem:[%s293 + $0x8] sm:$0xff]
      %v340 = vadd.f32 %v334, %v338
      %v341 = vadd.f32 %v336, %v339
      %vm342 = vcmask 261120
      %343 = vst.msk [vmem:[%s301] sm:$0xff] %vm342, %v340
      %344 = vst.msk [vmem:[%s301 + $0x8] sm:$0xff] %vm342, %v341
      %s345 = smul.u32 2, %s20
      %p346 = scmp.lt.s32.totalorder %s345, 3
      %s347 = scalar_select %p346, %s345, 3
      %p348 = scmp.lt.s32.totalorder %s21, 0
      %s349 = scalar_select %p348, %s21, 0
      %s350 = sadd.s32 %s349, %s347
      %s351 = smul.addr %s350, 8
      %s352 = scalar_lea.vmem %s4, %s351
      // Predicated region
      $region37: #{segmenter_forward.14} parent=35 // pred_check
        %p353 = pneg %p162
      $region38: #{segmenter_forward.14} parent=35 // pred_check_branch
        %355 = sbr.rel (%p353) target = $region40
      $region39: #{segmenter_forward.14} parent=35 // pred_region
        %s356 = smul.u32 2, %s20
      $region40: #{segmenter_forward.14} parent=35 // pred_fallthru
        _
    $region36: #{segmenter_forward.14} parent=5 // pred_fallthru
      _
    %p357 = scmp.le.s32.totalorder 2, %s10
    // Predicated region
    $region41: #{segmenter_forward.14} parent=5 // pred_check
      %p358 = pneg %p357
    $region42: #{segmenter_forward.14} parent=5 // pred_check_branch
      %360 = sbr.rel (%p358) target = $region44
    $region43: #{segmenter_forward.14} parent=5 // pred_region
      %s361 = ssub.s32 %s10, 2
      // Predicated region
      $region45: #{segmenter_forward.14} parent=43 // pred_check
        %p362 = pneg %p168
      $region46: #{segmenter_forward.14} parent=43 // pred_check_branch
        %364 = sbr.rel (%p362) target = $region48
      $region47: #{segmenter_forward.14} parent=43 // pred_region
        %s365 = smul.u32 2, %s23
        %p366 = scmp.lt.s32.totalorder %s365, 3
        %s367 = scalar_select %p366, %s365, 3
        %p368 = scmp.lt.s32.totalorder %s24, 0
        %s369 = scalar_select %p368, %s24, 0
        %s370 = sadd.s32 %s369, %s367
        %s371 = smul.addr %s370, 8
        %s372 = scalar_lea.vmem %s4, %s371
      $region48: #{segmenter_forward.14} parent=43 // pred_fallthru
        _
    $region44: #{segmenter_forward.14} parent=5 // pred_fallthru
      _
  $region6: #{segmenter_forward.14} parent=0 // loop_footer
    %s14 = sadd.s32 1, %s10
  $region7: #{segmenter_forward.14} parent=0 // loop_footer_branch
    %9 = sbr.rel target = $region3
  $region8: #{segmenter_forward.14} parent=0 // loop_exit
    _

// kernel: segmenter_forward.16
$region0: #{segmenter_forward.16}
  #allocation0 [shape = 'u32[]', space=smem, size = 0x4, offset = 0x4, fixed_abs, tag = 'smem constant byte address 0x4 - core index']
  #allocation1 [shape = 'u32[72,128]{1,0:T(1,128)}', space=vmem, size = 0x9000, scoped, tag = 'internal scratch']
  %s0 = inlined_call_operand.vmem [shape: f32[2,16,96], index: 0, kind: input, shape index: {}]
  %s1 = inlined_call_operand.vmem [shape: f32[2,16,32], index: 1, kind: output, shape index: {}]
  %s2 = sld [smem:[#allocation0]]
  $region37: #{segmenter_forward.16} parent=0
    _
  %s4 = ssub.s32 1, %s2
  %s5 = scalar_select 0, %s4, %s2
  loop: start=0, step=1, limit=4
  $region2: #{segmenter_forward.16} parent=0 // loop_pre_header
    _
  $region3: #{segmenter_forward.16} parent=0 // loop_header
    %s7 = sphi 0, %s11
    %p8 = scmp.ge.s32.totalorder %s7, 4
    %s17 = sphi 0, %s19
    %s20 = sphi 0, %s17
    %s21 = sphi 0, %s20
    %s37 = sphi 0, %s21
    %s43 = sphi 0, %s45
    %s46 = sphi 0, %s43
    %s47 = sphi 0, %s46
    %s63 = sphi 0, %s47
  $region4: #{segmenter_forward.16} parent=0 // loop_header_branch
    %10 = sbr.rel (%p8) target = $region8
  $region5: #{segmenter_forward.16} parent=0 // loop_body
    %s12 = ssub.s32 %s7, 1
    %s13 = ssub.s32 %s7, 2
    %s14 = sadd.s32 %s7, 1
    %s15 = ssub.s32 %s7, %s14
    %p16 = scmp.eq.s32.totalorder %s15, 0
    %s18 = sadd.s32 %s17, 1
    %s19 = scalar_select %p16, %s17, %s18
    %p22 = pneg %p16
    %p23 = scmp.eq.s32.totalorder %s7, 1
    %p24 = por %p22, %p23
    %p25 = scmp.ne.s32.totalorder %s17, %s20
    %p26 = scmp.eq.s32.totalorder %s7, 0
    %p27 = por %p25, %p26
    %p28 = scmp.ne.s32.totalorder %s17, %s20
    %p29 = scmp.eq.s32.totalorder %s12, 1
    %p30 = por %p28, %p29
    %p31 = scmp.ne.s32.totalorder %s20, %s21
    %p32 = scmp.eq.s32.totalorder %s12, 0
    %p33 = por %p31, %p32
    %p34 = scmp.ne.s32.totalorder %s20, %s21
    %p35 = scmp.eq.s32.totalorder %s13, 1
    %p36 = por %p34, %p35
    %p38 = scmp.ne.s32.totalorder %s21, %s37
    %p39 = scmp.eq.s32.totalorder %s13, 0
    %p40 = por %p38, %p39
    %s41 = ssub.s32 %s7, %s14
    %p42 = scmp.eq.s32.totalorder %s41, 0
    %s44 = sadd.s32 %s43, 1
    %s45 = scalar_select %p42, %s43, %s44
    %p48 = pneg %p42
    %p49 = scmp.eq.s32.totalorder %s7, 1
    %p50 = por %p48, %p49
    %p51 = scmp.ne.s32.totalorder %s43, %s46
    %p52 = scmp.eq.s32.totalorder %s7, 0
    %p53 = por %p51, %p52
    %p54 = scmp.ne.s32.totalorder %s43, %s46
    %p55 = scmp.eq.s32.totalorder %s12, 1
    %p56 = por %p54, %p55
    %p57 = scmp.ne.s32.totalorder %s46, %s47
    %p58 = scmp.eq.s32.totalorder %s12, 0
    %p59 = por %p57, %p58
    %p60 = scmp.ne.s32.totalorder %s46, %s47
    %p61 = scmp.eq.s32.totalorder %s13, 1
    %p62 = por %p60, %p61
    %p64 = scmp.ne.s32.totalorder %s47, %s63
    %p65 = scmp.eq.s32.totalorder %s13, 0
    %p66 = por %p64, %p65
    %p67 = scmp.le.s32.totalorder 1, %s7
    %p68 = scmp.lt.s32.totalorder %s7, 3
    %p69 = pnand %p67, %p68
    %p70 = pneg %p69
    // Predicated region
    $region9: #{segmenter_forward.16} parent=5 // pred_check
      _
    $region10: #{segmenter_forward.16} parent=5 // pred_check_branch
      %72 = sbr.rel (%p69) target = $region12
    $region11: #{segmenter_forward.16} parent=5 // pred_region
      %s73 = ssub.s32 %s7, 1
    $region12: #{segmenter_forward.16} parent=5 // pred_fallthru
      _
    %p74 = scmp.lt.s32.totalorder %s7, 2
    // Predicated region
    $region13: #{segmenter_forward.16} parent=5 // pred_check
      %p75 = pneg %p74
    $region14: #{segmenter_forward.16} parent=5 // pred_check_branch
      %77 = sbr.rel (%p75) target = $region16
    $region15: #{segmenter_forward.16} parent=5 // pred_region
      // Predicated region
      $region17: #{segmenter_forward.16} parent=15 // pred_check
        %p78 = pneg %p27
      $region18: #{segmenter_forward.16} parent=15 // pred_check_branch
        %80 = sbr.rel (%p78) target = $region20
      $region19: #{segmenter_forward.16} parent=15 // pred_region
        %p81 = scmp.lt.s32.totalorder %s7, 1
        %s82 = scalar_select %p81, %s7, 1
        %s83 = smul.addr %s82, 2
        %s84 = smul.addr %s83, 8
        %s85 = scalar_lea.vmem %s0, %s84
      $region20: #{segmenter_forward.16} parent=15 // pred_fallthru
        _
    $region16: #{segmenter_forward.16} parent=5 // pred_fallthru
      _
    %p86 = scmp.le.s32.totalorder 1, %s7
    %p87 = scmp.lt.s32.totalorder %s7, 3
    %p88 = pnand %p86, %p87
    %p89 = pneg %p88
    // Predicated region
    $region21: #{segmenter_forward.16} parent=5 // pred_check
      _
    $region22: #{segmenter_forward.16} parent=5 // pred_check_branch
      %91 = sbr.rel (%p88) target = $region24
    $region23: #{segmenter_forward.16} parent=5 // pred_region
      %s92 = ssub.s32 %s7, 1
      %p93 = scmp.lt.s32.totalorder %s12, 1
      %s94 = scalar_select %p93, %s12, 1
      %s95 = smul.addr %s94, 2
      %s96 = smul.addr %s95, 8
      %s97 = scalar_lea.vmem %s0, %s96
      %p98 = pneg %p33
      %p99 = pneg %p30
      %p100 = pneg %p59
      %p101 = pneg %p56
      %p102 = scmp.lt.s32.totalorder %s12, 1
      %s103 = scalar_select %p102, %s12, 1
      %s104 = smul.addr %s103, 2
      %s105 = smul.addr %s104, 8
      %s106 = scalar_lea.vmem %s1, %s105
      %p107 = scmp.lt.s32.totalorder %s12, 1
      %s108 = scalar_select %p107, %s12, 1
      %s109 = smul.addr %s108, 2
      %s110 = smul.addr %s109, 8
      %s111 = scalar_lea.vmem %s0, %s110
      %p112 = scmp.lt.s32.totalorder %s12, 1
      %s113 = scalar_select %p112, %s12, 1
      %s114 = smul.addr %s113, 2
      %s115 = smul.addr %s114, 8
      %s116 = scalar_lea.vmem %s1, %s115
      %v118 = vld [vmem:[%s111] sm:$0xff]
      %v119 = vld [vmem:[%s111 + $0x8] sm:$0xff]
      %v120 = vmul.f32 %v118, 0.25
      %v121 = vmul.f32 %v119, 0.25
      %v122 = vpack.c.bf16 %v121, %v120
      %v123 = vpack.c.bf16 %v119, %v118
      %125 = vrot.lane.b32.xlu0 %v123, 96
      %v126 = vpop.permute.xlu0 %125
      %vm127 = vcmask 130048
      %v129 = vsel %vm127, %v122, 0
      %v132 = vsel %vm127, %v126, 0
      %134 = vmatpush.bf16.xpose.msra.mxu0 0
      %135 = vmatpush.bf16.xpose.msra.mxu0 0
      %136 = vmatpush.bf16.xpose.msra.mxu0 0
      %137 = vmatpush.bf16.xpose.msra.mxu0 0
      %138 = vmatpush.bf16.xpose.msra.mxu0 0
      %139 = vmatpush.bf16.xpose.msra.mxu0 0
      %140 = vmatpush.bf16.xpose.msra.mxu0 0
      %141 = vmatpush.bf16.xpose.msra.mxu0 %v132
      %142 = vmatmul.bf16.gmra.mxu0 %v129
      %v143 = vpop.f32.mrf.mxu0
      %v144 = vadd.f32 0.0, %v143
      %v145 = vpop.f32.mrf.mxu0
      %v146 = vadd.f32 0.0, %v145
      %147 = vdwg.mxu0
      %v148 = vsel %vm127, %v144, -inf
      %149 = vmax.xlane.f32.xlu0 %v148
      %v150 = vpop.xlane.xlu0 %149
      %v151 = vsel %vm127, %v146, -inf
      %152 = vmax.xlane.f32.xlu0 %v151
      %v153 = vpop.xlane.xlu0 %152
      %v154 = vsub.f32 %v144, %v150
      %v155 = vsub.f32 %v146, %v153
      %v156 = vmul.f32 %v154, 1.442695
      %v157 = vpow.pop %v156
      %v158 = vmul.f32 %v155, 1.442695
      %v159 = vpow.pop %v158
      %v160 = vsel %vm127, %v157, 0.0
      %161 = vadd.xlane.f32.xlu0 %v160
      %v162 = vpop.xlane.xlu0 %161
      %v163 = vsel %vm127, %v159, 0.0
      %164 = vadd.xlane.f32.xlu0 %v163
      %v165 = vpop.xlane.xlu0 %164
      %v166 = vrcp.pop %v162
      %v167 = vrcp.pop %v165
      %v168 = vmul.f32 %v157, %v166
      %v169 = vmul.f32 %v159, %v167
      %v170 = vpack.c.bf16 %v169, %v168
      %171 = vrot.lane.b32.xlu0 %v123, 64
      %v172 = vpop.permute.xlu0 %171
      %v175 = vsel %vm127, %v170, 0
      %177 = vmatpush.bf16.msra.mxu0 0
      %178 = vmatpush.bf16.msra.mxu0 0
      %179 = vmatpush.bf16.msra.mxu0 0
      %180 = vmatpush.bf16.msra.mxu0 0
      %181 = vmatpush.bf16.msra.mxu0 0
      %182 = vmatpush.bf16.msra.mxu0 0
      %183 = vmatpush.bf16.msra.mxu0 0
      %184 = vmatpush.bf16.msra.mxu0 %v172
      %185 = vmatmul.bf16.gmra.mxu0 %v175
      %v186 = vpop.f32.mrf.mxu0
      %v187 = vadd.f32 0.0, %v186
      %v188 = vpop.f32.mrf.mxu0
      %v189 = vadd.f32 0.0, %v188
      %190 = vdwg.mxu0
      %192 = vrot.lane.b32.xlu0 %v122, 112
      %v193 = vpop.permute.xlu0 %192
      %194 = vrot.lane.b32.xlu0 %v123, 80
      %v195 = vpop.permute.xlu0 %194
      %v197 = vsel %vm127, %v193, 0
      %v200 = vsel %vm127, %v195, 0
      %202 = vmatpush.bf16.xpose.msra.mxu0 0
      %203 = vmatpush.bf16.xpose.msra.mxu0 0
      %204 = vmatpush.bf16.xpose.msra.mxu0 0
      %205 = vmatpush.bf16.xpose.msra.mxu0 0
      %206 = vmatpush.bf16.xpose.msra.mxu0 0
      %207 = vmatpush.bf16.xpose.msra.mxu0 0
      %208 = vmatpush.bf16.xpose.msra.mxu0 0
      %209 = vmatpush.bf16.xpose.msra.mxu0 %v200
      %210 = vmatmul.bf16.gmra.mxu0 %v197
      %v211 = vpop.f32.mrf.mxu0
      %v212 = vadd.f32 0.0, %v211
      %v213 = vpop.f32.mrf.mxu0
      %v214 = vadd.f32 0.0, %v213
      %215 = vdwg.mxu0
      %v216 = vsel %vm127, %v212, -inf
      %217 = vmax.xlane.f32.xlu0 %v216
      %v218 = vpop.xlane.xlu0 %217
      %v219 = vsel %vm127, %v214, -inf
      %220 = vmax.xlane.f32.xlu0 %v219
      %v221 = vpop.xlane.xlu0 %220
      %v222 = vsub.f32 %v212, %v218
      %v223 = vsub.f32 %v214, %v221
      %v224 = vmul.f32 %v222, 1.442695
      %v225 = vpow.pop %v224
      %v226 = vmul.f32 %v223, 1.442695
      %v227 = vpow.pop %v226
      %v228 = vsel %vm127, %v225, 0.0
      %229 = vadd.xlane.f32.xlu0 %v228
      %v230 = vpop.xlane.xlu0 %229
      %v231 = vsel %vm127, %v227, 0.0
      %232 = vadd.xlane.f32.xlu0 %v231
      %v233 = vpop.xlane.xlu0 %232
      %v234 = vrcp.pop %v230
      %v235 = vrcp.pop %v233
      %v236 = vmul.f32 %v225, %v234
      %v237 = vmul.f32 %v227, %v235
      %v238 = vpack.c.bf16 %v237, %v236
      %239 = vrot.lane.b32.xlu0 %v123, 48
      %v240 = vpop.permute.xlu0 %239
      %v243 = vsel %vm127, %v238, 0
      %245 = vmatpush.bf16.msra.mxu0 0
      %246 = vmatpush.bf16.msra.mxu0 0
      %247 = vmatpush.bf16.msra.mxu0 0
      %248 = vmatpush.bf16.msra.mxu0 0
      %249 = vmatpush.bf16.msra.mxu0 0
      %250 = vmatpush.bf16.msra.mxu0 0
      %251 = vmatpush.bf16.msra.mxu0 0
      %252 = vmatpush.bf16.msra.mxu0 %v240
      %253 = vmatmul.bf16.gmra.mxu0 %v243
      %v254 = vpop.f32.mrf.mxu0
      %v255 = vadd.f32 0.0, %v254
      %v256 = vpop.f32.mrf.mxu0
      %v257 = vadd.f32 0.0, %v256
      %258 = vdwg.mxu0
      %261 = vrot.lane.b32.xlu0 %v255, 16
      %v262 = vpop.permute.xlu0 %261
      %263 = vrot.lane.b32.xlu0 %v257, 16
      %v264 = vpop.permute.xlu0 %263
      %v267 = vsel %vm127, %v187, %v262
      %v268 = vsel %vm127, %v189, %v264
      %vm269 = vcmask 261120
      %270 = vst.msk [vmem:[%s116] sm:$0xff] %vm269, %v267
      %271 = vst.msk [vmem:[%s116 + $0x8] sm:$0xff] %vm269, %v268
      %p272 = scmp.lt.s32.totalorder %s12, 1
      %s273 = scalar_select %p272, %s12, 1
      %s274 = smul.addr %s273, 2
      %s275 = smul.addr %s274, 8
      %s276 = scalar_lea.vmem %s1, %s275
      // Predicated region
      $region25: #{segmenter_forward.16} parent=23 // pred_check
        %p277 = pneg %p56
      $region26: #{segmenter_forward.16} parent=23 // pred_check_branch
        %279 = sbr.rel (%p277) target = $region28
      $region27: #{segmenter_forward.16} parent=23 // pred_region
        _
      $region28: #{segmenter_forward.16} parent=23 // pred_fallthru
        _
    $region24: #{segmenter_forward.16} parent=5 // pred_fallthru
      _
    %p280 = scmp.le.s32.totalorder 2, %s7
    // Predicated region
    $region29: #{segmenter_forward.16} parent=5 // pred_check
      %p281 = pneg %p280
    $region30: #{segmenter_forward.16} parent=5 // pred_check_branch
      %283 = sbr.rel (%p281) target = $region32
    $region31: #{segmenter_forward.16} parent=5 // pred_region
      %s284 = ssub.s32 %s7, 2
      // Predicated region
      $region33: #{segmenter_forward.16} parent=31 // pred_check
        %p285 = pneg %p62
      $region34: #{segmenter_forward.16} parent=31 // pred_check_branch
        %287 = sbr.rel (%p285) target = $region36
      $region35: #{segmenter_forward.16} parent=31 // pred_region
        %p288 = scmp.lt.s32.totalorder %s13, 1
        %s289 = scalar_select %p288, %s13, 1
        %s290 = smul.addr %s289, 2
        %s291 = smul.addr %s290, 8
        %s292 = scalar_lea.vmem %s1, %s291
      $region36: #{segmenter_forward.16} parent=31 // pred_fallthru
        _
    $region32: #{segmenter_forward.16} parent=5 // pred_fallthru
      _
  $region6: #{segmenter_forward.16} parent=0 // loop_footer
    %s11 = sadd.s32 1, %s7
  $region7: #{segmenter_forward.16} parent=0 // loop_footer_branch
    %6 = sbr.rel target = $region3
  $region8: #{segmenter_forward.16} parent=0 // loop_exit
    _

// kernel: segmenter_forward.17
$region0: #{segmenter_forward.17}
  #allocation0 [shape = 'u32[]', space=smem, size = 0x4, offset = 0x4, fixed_abs, tag = 'smem constant byte address 0x4 - core index']
  #allocation1 [shape = 'u32[72,128]{1,0:T(1,128)}', space=vmem, size = 0x9000, scoped, tag = 'internal scratch']
  %s0 = inlined_call_operand.vmem [shape: f32[32,32], index: 0, kind: input, shape index: {}]
  %s1 = inlined_call_operand.vmem [shape: f32[32,32], index: 1, kind: input, shape index: {}]
  %s2 = inlined_call_operand.vmem [shape: f32[1,32], index: 2, kind: input, shape index: {}]
  %s3 = inlined_call_operand.vmem [shape: f32[32,32], index: 3, kind: input, shape index: {}]
  %s4 = inlined_call_operand.vmem [shape: f32[32,32], index: 4, kind: output, shape index: {}]
  %s5 = sld [smem:[#allocation0]]
  $region26: #{segmenter_forward.17} parent=0
    _
  %s7 = ssub.s32 1, %s5
  %s8 = scalar_select 0, %s7, %s5
  // Predicated region
  $region2: #{segmenter_forward.17} parent=0 // pred_check
    _
  $region3: #{segmenter_forward.17} parent=0 // pred_check_branch
    %10 = sbr.rel (0) target = $region5
  $region4: #{segmenter_forward.17} parent=0 // pred_region
    _
  $region5: #{segmenter_forward.17} parent=0 // pred_fallthru
    _
  // Predicated region
  $region6: #{segmenter_forward.17} parent=0 // pred_check
    _
  $region7: #{segmenter_forward.17} parent=0 // pred_check_branch
    %12 = sbr.rel (0) target = $region9
  $region8: #{segmenter_forward.17} parent=0 // pred_region
    _
  $region9: #{segmenter_forward.17} parent=0 // pred_fallthru
    _
  // Predicated region
  $region10: #{segmenter_forward.17} parent=0 // pred_check
    _
  $region11: #{segmenter_forward.17} parent=0 // pred_check_branch
    %14 = sbr.rel (0) target = $region13
  $region12: #{segmenter_forward.17} parent=0 // pred_region
    _
  $region13: #{segmenter_forward.17} parent=0 // pred_fallthru
    _
  // Predicated region
  $region14: #{segmenter_forward.17} parent=0 // pred_check
    _
  $region15: #{segmenter_forward.17} parent=0 // pred_check_branch
    %16 = sbr.rel (0) target = $region17
  $region16: #{segmenter_forward.17} parent=0 // pred_region
    _
  $region17: #{segmenter_forward.17} parent=0 // pred_fallthru
    _
  %v18 = vld [vmem:[%s0] sm:$0xff]
  %v19 = vld [vmem:[%s0 + $0x8] sm:$0xff]
  %v20 = vld [vmem:[%s0 + $0x10] sm:$0xff]
  %v21 = vld [vmem:[%s0 + $0x18] sm:$0xff]
  %v22 = vld [vmem:[%s1] sm:$0xff]
  %v23 = vld [vmem:[%s1 + $0x8] sm:$0xff]
  %v24 = vld [vmem:[%s1 + $0x10] sm:$0xff]
  %v25 = vld [vmem:[%s1 + $0x18] sm:$0xff]
  %v26 = vpack.c.bf16 %v19, %v18
  %v27 = vpack.c.bf16 %v21, %v20
  %v28 = vpack.c.bf16 %v23, %v22
  %v29 = vpack.c.bf16 %v25, %v24
  %v30 = vld [vmem:[%s2] sm:$0x1]
  %v32 = vperm.slane %v30, 0
  %vm34 = vcmask 261120
  %v36 = vsel %vm34, %v26, 0
  %v39 = vsel %vm34, %v27, 0
  %41 = vmatpush.bf16.msra.mxu0 0
  %42 = vmatpush.bf16.msra.mxu0 0
  %43 = vmatpush.bf16.msra.mxu0 0
  %44 = vmatpush.bf16.msra.mxu0 0
  %45 = vmatpush.bf16.msra.mxu0 0
  %46 = vmatpush.bf16.msra.mxu0 0
  %47 = vmatpush.bf16.msra.mxu0 %v29
  %48 = vmatpush.bf16.msra.mxu0 %v28
  %49 = vmatmul.bf16.gmra.mxu0 %v36
  %v50 = vpop.f32.mrf.mxu0
  %v51 = vadd.f32 %v32, %v50
  %v52 = vpop.f32.mrf.mxu0
  %v53 = vadd.f32 %v32, %v52
  %54 = vmatmul.bf16.gmra.mxu0 %v39
  %v55 = vpop.f32.mrf.mxu0
  %v56 = vadd.f32 %v32, %v55
  %v57 = vpop.f32.mrf.mxu0
  %v58 = vadd.f32 %v32, %v57
  %59 = vdwg.mxu0
  %v60 = vld [vmem:[%s3] sm:$0xff]
  %v61 = vld [vmem:[%s3 + $0x8] sm:$0xff]
  %v62 = vld [vmem:[%s3 + $0x10] sm:$0xff]
  %v63 = vld [vmem:[%s3 + $0x18] sm:$0xff]
  %v64 = vadd.f32 %v51, %v60
  %v65 = vadd.f32 %v53, %v61
  %v66 = vadd.f32 %v56, %v62
  %v67 = vadd.f32 %v58, %v63
  %68 = vst.msk [vmem:[%s4] sm:$0xff] %vm34, %v64
  %69 = vst.msk [vmem:[%s4 + $0x8] sm:$0xff] %vm34, %v65
  %70 = vst.msk [vmem:[%s4 + $0x10] sm:$0xff] %vm34, %v66
  %71 = vst.msk [vmem:[%s4 + $0x18] sm:$0xff] %vm34, %v67
  // Predicated region
  $region18: #{segmenter_forward.17} parent=0 // pred_check
    _
  $region19: #{segmenter_forward.17} parent=0 // pred_check_branch
    %73 = sbr.rel (0) target = $region21
  $region20: #{segmenter_forward.17} parent=0 // pred_region
    _
  $region21: #{segmenter_forward.17} parent=0 // pred_fallthru
    _
  // Predicated region
  $region22: #{segmenter_forward.17} parent=0 // pred_check
    _
  $region23: #{segmenter_forward.17} parent=0 // pred_check_branch
    %75 = sbr.rel (0) target = $region25
  $region24: #{segmenter_forward.17} parent=0 // pred_region
    _
  $region25: #{segmenter_forward.17} parent=0 // pred_fallthru
    _

// kernel: segmenter_forward.15
$region0: #{segmenter_forward.15}
  #allocation0 [shape = 'u32[]', space=smem, size = 0x4, offset = 0x4, fixed_abs, tag = 'smem constant byte address 0x4 - core index']
  #allocation1 [shape = 'u32[72,128]{1,0:T(1,128)}', space=vmem, size = 0x9000, scoped, tag = 'internal scratch']
  %s0 = inlined_call_operand.vmem [shape: f32[32,32], index: 0, kind: input, shape index: {}]
  %s1 = inlined_call_operand.vmem [shape: f32[1,32], index: 1, kind: input, shape index: {}]
  %s2 = inlined_call_operand.vmem [shape: f32[1,32], index: 2, kind: input, shape index: {}]
  %s3 = inlined_call_operand.vmem [shape: f32[32,96], index: 3, kind: input, shape index: {}]
  %s4 = inlined_call_operand.vmem [shape: f32[1,96], index: 4, kind: input, shape index: {}]
  %s5 = inlined_call_operand.vmem [shape: f32[32,96], index: 5, kind: output, shape index: {}]
  %s6 = sld [smem:[#allocation0]]
  $region30: #{segmenter_forward.15} parent=0
    _
  %s8 = ssub.s32 1, %s6
  %s9 = scalar_select 0, %s8, %s6
  // Predicated region
  $region2: #{segmenter_forward.15} parent=0 // pred_check
    _
  $region3: #{segmenter_forward.15} parent=0 // pred_check_branch
    %11 = sbr.rel (0) target = $region5
  $region4: #{segmenter_forward.15} parent=0 // pred_region
    _
  $region5: #{segmenter_forward.15} parent=0 // pred_fallthru
    _
  // Predicated region
  $region6: #{segmenter_forward.15} parent=0 // pred_check
    _
  $region7: #{segmenter_forward.15} parent=0 // pred_check_branch
    %13 = sbr.rel (0) target = $region9
  $region8: #{segmenter_forward.15} parent=0 // pred_region
    _
  $region9: #{segmenter_forward.15} parent=0 // pred_fallthru
    _
  // Predicated region
  $region10: #{segmenter_forward.15} parent=0 // pred_check
    _
  $region11: #{segmenter_forward.15} parent=0 // pred_check_branch
    %15 = sbr.rel (0) target = $region13
  $region12: #{segmenter_forward.15} parent=0 // pred_region
    _
  $region13: #{segmenter_forward.15} parent=0 // pred_fallthru
    _
  // Predicated region
  $region14: #{segmenter_forward.15} parent=0 // pred_check
    _
  $region15: #{segmenter_forward.15} parent=0 // pred_check_branch
    %17 = sbr.rel (0) target = $region17
  $region16: #{segmenter_forward.15} parent=0 // pred_region
    _
  $region17: #{segmenter_forward.15} parent=0 // pred_fallthru
    _
  // Predicated region
  $region18: #{segmenter_forward.15} parent=0 // pred_check
    _
  $region19: #{segmenter_forward.15} parent=0 // pred_check_branch
    %19 = sbr.rel (0) target = $region21
  $region20: #{segmenter_forward.15} parent=0 // pred_region
    _
  $region21: #{segmenter_forward.15} parent=0 // pred_fallthru
    _
  %v21 = vld [vmem:[%s0] sm:$0xff]
  %v22 = vld [vmem:[%s0 + $0x8] sm:$0xff]
  %v23 = vld [vmem:[%s0 + $0x10] sm:$0xff]
  %v24 = vld [vmem:[%s0 + $0x18] sm:$0xff]
  %vm25 = vcmask 261120
  %v26 = vsel %vm25, %v21, 0.0
  %27 = vadd.xlane.f32.xlu0 %v26
  %v28 = vpop.xlane.xlu0 %27
  %v29 = vsel %vm25, %v22, 0.0
  %30 = vadd.xlane.f32.xlu0 %v29
  %v31 = vpop.xlane.xlu0 %30
  %v32 = vsel %vm25, %v23, 0.0
  %33 = vadd.xlane.f32.xlu0 %v32
  %v34 = vpop.xlane.xlu0 %33
  %v35 = vsel %vm25, %v24, 0.0
  %36 = vadd.xlane.f32.xlu0 %v35
  %v37 = vpop.xlane.xlu0 %36
  %v38 = vrcp.pop 32.0
  %v39 = vmul.f32 32.0, %v38
  %v40 = vsub.f32 1.0, %v39
  %v41 = vmul.f32 %v38, %v40
  %v42 = vadd.f32 %v38, %v41
  %vm43 = vweird.f32 %v38
  %v44 = vsel %vm43, %v38, %v42
  %v45 = vmul.f32 %v28, %v44
  %v46 = vmul.f32 %v31, %v44
  %v47 = vmul.f32 %v34, %v44
  %v48 = vmul.f32 %v37, %v44
  %v49 = vsub.f32 %v21, %v45
  %v50 = vsub.f32 %v22, %v46
  %v51 = vsub.f32 %v23, %v47
  %v52 = vsub.f32 %v24, %v48
  %v53 = vmul.f32 %v49, %v49
  %v54 = vmul.f32 %v50, %v50
  %v55 = vmul.f32 %v51, %v51
  %v56 = vmul.f32 %v52, %v52
  %v57 = vsel %vm25, %v53, 0.0
  %58 = vadd.xlane.f32.xlu0 %v57
  %v59 = vpop.xlane.xlu0 %58
  %v60 = vsel %vm25, %v54, 0.0
  %61 = vadd.xlane.f32.xlu0 %v60
  %v62 = vpop.xlane.xlu0 %61
  %v63 = vsel %vm25, %v55, 0.0
  %64 = vadd.xlane.f32.xlu0 %v63
  %v65 = vpop.xlane.xlu0 %64
  %v66 = vsel %vm25, %v56, 0.0
  %67 = vadd.xlane.f32.xlu0 %v66
  %v68 = vpop.xlane.xlu0 %67
  %v69 = vmul.f32 %v59, %v44
  %v70 = vmul.f32 %v62, %v44
  %v71 = vmul.f32 %v65, %v44
  %v72 = vmul.f32 %v68, %v44
  %v73 = vadd.f32 %v69, 1e-05
  %v74 = vadd.f32 %v70, 1e-05
  %v75 = vadd.f32 %v71, 1e-05
  %v76 = vadd.f32 %v72, 1e-05
  %v77 = vrsqrt.pop %v73
  %v78 = vmul.f32 %v77, %v73
  %v79 = vmul.f32 %v78, %v77
  %v80 = vmul.f32 0.5, %v79
  %v81 = vsub.f32 1.5, %v80
  %v82 = vmul.f32 %v77, %v81
  %vm83 = vweird.f32 %v73
  %vm84 = vweird.f32 %v77
  %vm85 = vmor %vm83, %vm84
  %v86 = vsel %vm85, %v77, %v82
  %v87 = vrsqrt.pop %v74
  %v88 = vmul.f32 %v87, %v74
  %v89 = vmul.f32 %v88, %v87
  %v90 = vmul.f32 0.5, %v89
  %v91 = vsub.f32 1.5, %v90
  %v92 = vmul.f32 %v87, %v91
  %vm93 = vweird.f32 %v74
  %vm94 = vweird.f32 %v87
  %vm95 = vmor %vm93, %vm94
  %v96 = vsel %vm95, %v87, %v92
  %v97 = vrsqrt.pop %v75
  %v98 = vmul.f32 %v97, %v75
  %v99 = vmul.f32 %v98, %v97
  %v100 = vmul.f32 0.5, %v99
  %v101 = vsub.f32 1.5, %v100
  %v102 = vmul.f32 %v97, %v101
  %vm103 = vweird.f32 %v75
  %vm104 = vweird.f32 %v97
  %vm105 = vmor %vm103, %vm104
  %v106 = vsel %vm105, %v97, %v102
  %v107 = vrsqrt.pop %v76
  %v108 = vmul.f32 %v107, %v76
  %v109 = vmul.f32 %v108, %v107
  %v110 = vmul.f32 0.5, %v109
  %v111 = vsub.f32 1.5, %v110
  %v112 = vmul.f32 %v107, %v111
  %vm113 = vweird.f32 %v76
  %vm114 = vweird.f32 %v107
  %vm115 = vmor %vm113, %vm114
  %v116 = vsel %vm115, %v107, %v112
  %v117 = vmul.f32 %v49, %v86
  %v118 = vmul.f32 %v50, %v96
  %v119 = vmul.f32 %v51, %v106
  %v120 = vmul.f32 %v52, %v116
  %v121 = vld [vmem:[%s1] sm:$0x1]
  %v123 = vperm.slane %v121, 0
  %v125 = vmul.f32 %v117, %v123
  %v126 = vmul.f32 %v118, %v123
  %v127 = vmul.f32 %v119, %v123
  %v128 = vmul.f32 %v120, %v123
  %v129 = vld [vmem:[%s2] sm:$0x1]
  %v131 = vperm.slane %v129, 0
  %v133 = vadd.f32 %v125, %v131
  %v134 = vadd.f32 %v126, %v131
  %v135 = vadd.f32 %v127, %v131
  %v136 = vadd.f32 %v128, %v131
  %v137 = vpack.c.bf16 %v134, %v133
  %v138 = vpack.c.bf16 %v136, %v135
  %v139 = vld [vmem:[%s3] sm:$0xff]
  %v140 = vld [vmem:[%s3 + $0x8] sm:$0xff]
  %v141 = vld [vmem:[%s3 + $0x10] sm:$0xff]
  %v142 = vld [vmem:[%s3 + $0x18] sm:$0xff]
  %v143 = vpack.c.bf16 %v140, %v139
  %v144 = vpack.c.bf16 %v142, %v141
  %v145 = vld [vmem:[%s4] sm:$0x1]
  %v147 = vperm.slane %v145, 0
  %v150 = vsel %vm25, %v137, 0
  %v153 = vsel %vm25, %v138, 0
  %155 = vmatpush.bf16.msra.mxu0 0
  %156 = vmatpush.bf16.msra.mxu0 0
  %157 = vmatpush.bf16.msra.mxu0 0
  %158 = vmatpush.bf16.msra.mxu0 0
  %159 = vmatpush.bf16.msra.mxu0 0
  %160 = vmatpush.bf16.msra.mxu0 0
  %161 = vmatpush.bf16.msra.mxu0 %v144
  %162 = vmatpush.bf16.msra.mxu0 %v143
  %163 = vmatmul.bf16.gmra.mxu0 %v150
  %v164 = vpop.f32.mrf.mxu0
  %v165 = vadd.f32 %v147, %v164
  %v166 = vpop.f32.mrf.mxu0
  %v167 = vadd.f32 %v147, %v166
  %168 = vmatmul.bf16.gmra.mxu0 %v153
  %v169 = vpop.f32.mrf.mxu0
  %v170 = vadd.f32 %v147, %v169
  %v171 = vpop.f32.mrf.mxu0
  %v172 = vadd.f32 %v147, %v171
  %173 = vdwg.mxu0
  %vm174 = vcmask 785408
  %175 = vst.msk [vmem:[%s5] sm:$0xff] %vm174, %v165
  %176 = vst.msk [vmem:[%s5 + $0x8] sm:$0xff] %vm174, %v167
  %177 = vst.msk [vmem:[%s5 + $0x10] sm:$0xff] %vm174, %v170
  %178 = vst.msk [vmem:[%s5 + $0x18] sm:$0xff] %vm174, %v172
  // Predicated region
  $region22: #{segmenter_forward.15} parent=0 // pred_check
    _
  $region23: #{segmenter_forward.15} parent=0 // pred_check_branch
    %180 = sbr.rel (0) target = $region25
  $region24: #{segmenter_forward.15} parent=0 // pred_region
    _
  $region25: #{segmenter_forward.15} parent=0 // pred_fallthru
    _
  // Predicated region
  $region26: #{segmenter_forward.15} parent=0 // pred_check
    _
  $region27: #{segmenter_forward.15} parent=0 // pred_check_branch
    %182 = sbr.rel (0) target = $region29
  $region28: #{segmenter_forward.15} parent=0 // pred_region
    _
  $region29: #{segmenter_forward.15} parent=0 // pred_fallthru
    _

// kernel: segmenter_forward.19
$region0: #{segmenter_forward.19}
  #allocation0 [shape = 'u32[]', space=smem, size = 0x4, offset = 0x4, fixed_abs, tag = 'smem constant byte address 0x4 - core index']
  #allocation1 [shape = 'u32[72,128]{1,0:T(1,128)}', space=vmem, size = 0x9000, scoped, tag = 'internal scratch']
  %s0 = inlined_call_operand.vmem [shape: f32[32,64], index: 0, kind: input, shape index: {}]
  %s1 = inlined_call_operand.vmem [shape: f32[64,32], index: 1, kind: input, shape index: {}]
  %s2 = inlined_call_operand.vmem [shape: f32[1,32], index: 2, kind: input, shape index: {}]
  %s3 = inlined_call_operand.vmem [shape: f32[32,32], index: 3, kind: input, shape index: {}]
  %s4 = inlined_call_operand.vmem [shape: f32[32,32], index: 4, kind: output, shape index: {}]
  %s5 = sld [smem:[#allocation0]]
  $region26: #{segmenter_forward.19} parent=0
    _
  %s7 = ssub.s32 1, %s5
  %s8 = scalar_select 0, %s7, %s5
  // Predicated region
  $region2: #{segmenter_forward.19} parent=0 // pred_check
    _
  $region3: #{segmenter_forward.19} parent=0 // pred_check_branch
    %10 = sbr.rel (0) target = $region5
  $region4: #{segmenter_forward.19} parent=0 // pred_region
    _
  $region5: #{segmenter_forward.19} parent=0 // pred_fallthru
    _
  // Predicated region
  $region6: #{segmenter_forward.19} parent=0 // pred_check
    _
  $region7: #{segmenter_forward.19} parent=0 // pred_check_branch
    %12 = sbr.rel (0) target = $region9
  $region8: #{segmenter_forward.19} parent=0 // pred_region
    _
  $region9: #{segmenter_forward.19} parent=0 // pred_fallthru
    _
  // Predicated region
  $region10: #{segmenter_forward.19} parent=0 // pred_check
    _
  $region11: #{segmenter_forward.19} parent=0 // pred_check_branch
    %14 = sbr.rel (0) target = $region13
  $region12: #{segmenter_forward.19} parent=0 // pred_region
    _
  $region13: #{segmenter_forward.19} parent=0 // pred_fallthru
    _
  // Predicated region
  $region14: #{segmenter_forward.19} parent=0 // pred_check
    _
  $region15: #{segmenter_forward.19} parent=0 // pred_check_branch
    %16 = sbr.rel (0) target = $region17
  $region16: #{segmenter_forward.19} parent=0 // pred_region
    _
  $region17: #{segmenter_forward.19} parent=0 // pred_fallthru
    _
  %v18 = vld [vmem:[%s0] sm:$0xff]
  %v19 = vld [vmem:[%s0 + $0x8] sm:$0xff]
  %v20 = vld [vmem:[%s0 + $0x10] sm:$0xff]
  %v21 = vld [vmem:[%s0 + $0x18] sm:$0xff]
  %v22 = vld [vmem:[%s1] sm:$0xff]
  %v23 = vld [vmem:[%s1 + $0x8] sm:$0xff]
  %v24 = vld [vmem:[%s1 + $0x10] sm:$0xff]
  %v25 = vld [vmem:[%s1 + $0x18] sm:$0xff]
  %v26 = vld [vmem:[%s1 + $0x20] sm:$0xff]
  %v27 = vld [vmem:[%s1 + $0x28] sm:$0xff]
  %v28 = vld [vmem:[%s1 + $0x30] sm:$0xff]
  %v29 = vld [vmem:[%s1 + $0x38] sm:$0xff]
  %v30 = vpack.c.bf16 %v19, %v18
  %v31 = vpack.c.bf16 %v21, %v20
  %v32 = vpack.c.bf16 %v23, %v22
  %v33 = vpack.c.bf16 %v25, %v24
  %v34 = vpack.c.bf16 %v27, %v26
  %v35 = vpack.c.bf16 %v29, %v28
  %v36 = vld [vmem:[%s2] sm:$0x1]
  %v38 = vperm.slane %v36, 0
  %vm40 = vcmask 523264
  %v42 = vsel %vm40, %v30, 0
  %v45 = vsel %vm40, %v31, 0
  %47 = vmatpush.bf16.msra.mxu0 0
  %48 = vmatpush.bf16.msra.mxu0 0
  %49 = vmatpush.bf16.msra.mxu0 0
  %50 = vmatpush.bf16.msra.mxu0 0
  %51 = vmatpush.bf16.msra.mxu0 %v35
  %52 = vmatpush.bf16.msra.mxu0 %v34
  %53 = vmatpush.bf16.msra.mxu0 %v33
  %54 = vmatpush.bf16.msra.mxu0 %v32
  %55 = vmatmul.bf16.gmra.mxu0 %v42
  %v56 = vpop.f32.mrf.mxu0
  %v57 = vadd.f32 %v38, %v56
  %v58 = vpop.f32.mrf.mxu0
  %v59 = vadd.f32 %v38, %v58
  %60 = vmatmul.bf16.gmra.mxu0 %v45
  %v61 = vpop.f32.mrf.mxu0
  %v62 = vadd.f32 %v38, %v61
  %v63 = vpop.f32.mrf.mxu0
  %v64 = vadd.f32 %v38, %v63
  %65 = vdwg.mxu0
  %v66 = vld [vmem:[%s3] sm:$0xff]
  %v67 = vld [vmem:[%s3 + $0x8] sm:$0xff]
  %v68 = vld [vmem:[%s3 + $0x10] sm:$0xff]
  %v69 = vld [vmem:[%s3 + $0x18] sm:$0xff]
  %v70 = vadd.f32 %v57, %v66
  %v71 = vadd.f32 %v59, %v67
  %v72 = vadd.f32 %v62, %v68
  %v73 = vadd.f32 %v64, %v69
  %vm74 = vcmask 261120
  %75 = vst.msk [vmem:[%s4] sm:$0xff] %vm74, %v70
  %76 = vst.msk [vmem:[%s4 + $0x8] sm:$0xff] %vm74, %v71
  %77 = vst.msk [vmem:[%s4 + $0x10] sm:$0xff] %vm74, %v72
  %78 = vst.msk [vmem:[%s4 + $0x18] sm:$0xff] %vm74, %v73
  // Predicated region
  $region18: #{segmenter_forward.19} parent=0 // pred_check
    _
  $region19: #{segmenter_forward.19} parent=0 // pred_check_branch
    %80 = sbr.rel (0) target = $region21
  $region20: #{segmenter_forward.19} parent=0 // pred_region
    _
  $region21: #{segmenter_forward.19} parent=0 // pred_fallthru
    _
  // Predicated region
  $region22: #{segmenter_forward.19} parent=0 // pred_check
    _
  $region23: #{segmenter_forward.19} parent=0 // pred_check_branch
    %82 = sbr.rel (0) target = $region25
  $region24: #{segmenter_forward.19} parent=0 // pred_region
    _
  $region25: #{segmenter_forward.19} parent=0 // pred_fallthru
    _

// kernel: segmenter_forward.18
$region0: #{segmenter_forward.18}
  #allocation0 [shape = 'u32[]', space=smem, size = 0x4, offset = 0x4, fixed_abs, tag = 'smem constant byte address 0x4 - core index']
  #allocation1 [shape = 'u32[72,128]{1,0:T(1,128)}', space=vmem, size = 0x9000, scoped, tag = 'internal scratch']
  %s0 = inlined_call_operand.vmem [shape: f32[32,32], index: 0, kind: input, shape index: {}]
  %s1 = inlined_call_operand.vmem [shape: f32[1,32], index: 1, kind: input, shape index: {}]
  %s2 = inlined_call_operand.vmem [shape: f32[1,32], index: 2, kind: input, shape index: {}]
  %s3 = inlined_call_operand.vmem [shape: f32[32,64], index: 3, kind: input, shape index: {}]
  %s4 = inlined_call_operand.vmem [shape: f32[1,64], index: 4, kind: input, shape index: {}]
  %s5 = inlined_call_operand.vmem [shape: f32[32,64], index: 5, kind: output, shape index: {}]
  %s6 = sld [smem:[#allocation0]]
  $region30: #{segmenter_forward.18} parent=0
    _
  %s8 = ssub.s32 1, %s6
  %s9 = scalar_select 0, %s8, %s6
  // Predicated region
  $region2: #{segmenter_forward.18} parent=0 // pred_check
    _
  $region3: #{segmenter_forward.18} parent=0 // pred_check_branch
    %11 = sbr.rel (0) target = $region5
  $region4: #{segmenter_forward.18} parent=0 // pred_region
    _
  $region5: #{segmenter_forward.18} parent=0 // pred_fallthru
    _
  // Predicated region
  $region6: #{segmenter_forward.18} parent=0 // pred_check
    _
  $region7: #{segmenter_forward.18} parent=0 // pred_check_branch
    %13 = sbr.rel (0) target = $region9
  $region8: #{segmenter_forward.18} parent=0 // pred_region
    _
  $region9: #{segmenter_forward.18} parent=0 // pred_fallthru
    _
  // Predicated region
  $region10: #{segmenter_forward.18} parent=0 // pred_check
    _
  $region11: #{segmenter_forward.18} parent=0 // pred_check_branch
    %15 = sbr.rel (0) target = $region13
  $region12: #{segmenter_forward.18} parent=0 // pred_region
    _
  $region13: #{segmenter_forward.18} parent=0 // pred_fallthru
    _
  // Predicated region
  $region14: #{segmenter_forward.18} parent=0 // pred_check
    _
  $region15: #{segmenter_forward.18} parent=0 // pred_check_branch
    %17 = sbr.rel (0) target = $region17
  $region16: #{segmenter_forward.18} parent=0 // pred_region
    _
  $region17: #{segmenter_forward.18} parent=0 // pred_fallthru
    _
  // Predicated region
  $region18: #{segmenter_forward.18} parent=0 // pred_check
    _
  $region19: #{segmenter_forward.18} parent=0 // pred_check_branch
    %19 = sbr.rel (0) target = $region21
  $region20: #{segmenter_forward.18} parent=0 // pred_region
    _
  $region21: #{segmenter_forward.18} parent=0 // pred_fallthru
    _
  %v21 = vld [vmem:[%s0] sm:$0xff]
  %v22 = vld [vmem:[%s0 + $0x8] sm:$0xff]
  %v23 = vld [vmem:[%s0 + $0x10] sm:$0xff]
  %v24 = vld [vmem:[%s0 + $0x18] sm:$0xff]
  %vm25 = vcmask 261120
  %v26 = vsel %vm25, %v21, 0.0
  %27 = vadd.xlane.f32.xlu0 %v26
  %v28 = vpop.xlane.xlu0 %27
  %v29 = vsel %vm25, %v22, 0.0
  %30 = vadd.xlane.f32.xlu0 %v29
  %v31 = vpop.xlane.xlu0 %30
  %v32 = vsel %vm25, %v23, 0.0
  %33 = vadd.xlane.f32.xlu0 %v32
  %v34 = vpop.xlane.xlu0 %33
  %v35 = vsel %vm25, %v24, 0.0
  %36 = vadd.xlane.f32.xlu0 %v35
  %v37 = vpop.xlane.xlu0 %36
  %v38 = vrcp.pop 32.0
  %v39 = vmul.f32 32.0, %v38
  %v40 = vsub.f32 1.0, %v39
  %v41 = vmul.f32 %v38, %v40
  %v42 = vadd.f32 %v38, %v41
  %vm43 = vweird.f32 %v38
  %v44 = vsel %vm43, %v38, %v42
  %v45 = vmul.f32 %v28, %v44
  %v46 = vmul.f32 %v31, %v44
  %v47 = vmul.f32 %v34, %v44
  %v48 = vmul.f32 %v37, %v44
  %v49 = vsub.f32 %v21, %v45
  %v50 = vsub.f32 %v22, %v46
  %v51 = vsub.f32 %v23, %v47
  %v52 = vsub.f32 %v24, %v48
  %v53 = vmul.f32 %v49, %v49
  %v54 = vmul.f32 %v50, %v50
  %v55 = vmul.f32 %v51, %v51
  %v56 = vmul.f32 %v52, %v52
  %v57 = vsel %vm25, %v53, 0.0
  %58 = vadd.xlane.f32.xlu0 %v57
  %v59 = vpop.xlane.xlu0 %58
  %v60 = vsel %vm25, %v54, 0.0
  %61 = vadd.xlane.f32.xlu0 %v60
  %v62 = vpop.xlane.xlu0 %61
  %v63 = vsel %vm25, %v55, 0.0
  %64 = vadd.xlane.f32.xlu0 %v63
  %v65 = vpop.xlane.xlu0 %64
  %v66 = vsel %vm25, %v56, 0.0
  %67 = vadd.xlane.f32.xlu0 %v66
  %v68 = vpop.xlane.xlu0 %67
  %v69 = vmul.f32 %v59, %v44
  %v70 = vmul.f32 %v62, %v44
  %v71 = vmul.f32 %v65, %v44
  %v72 = vmul.f32 %v68, %v44
  %v73 = vadd.f32 %v69, 1e-05
  %v74 = vadd.f32 %v70, 1e-05
  %v75 = vadd.f32 %v71, 1e-05
  %v76 = vadd.f32 %v72, 1e-05
  %v77 = vrsqrt.pop %v73
  %v78 = vmul.f32 %v77, %v73
  %v79 = vmul.f32 %v78, %v77
  %v80 = vmul.f32 0.5, %v79
  %v81 = vsub.f32 1.5, %v80
  %v82 = vmul.f32 %v77, %v81
  %vm83 = vweird.f32 %v73
  %vm84 = vweird.f32 %v77
  %vm85 = vmor %vm83, %vm84
  %v86 = vsel %vm85, %v77, %v82
  %v87 = vrsqrt.pop %v74
  %v88 = vmul.f32 %v87, %v74
  %v89 = vmul.f32 %v88, %v87
  %v90 = vmul.f32 0.5, %v89
  %v91 = vsub.f32 1.5, %v90
  %v92 = vmul.f32 %v87, %v91
  %vm93 = vweird.f32 %v74
  %vm94 = vweird.f32 %v87
  %vm95 = vmor %vm93, %vm94
  %v96 = vsel %vm95, %v87, %v92
  %v97 = vrsqrt.pop %v75
  %v98 = vmul.f32 %v97, %v75
  %v99 = vmul.f32 %v98, %v97
  %v100 = vmul.f32 0.5, %v99
  %v101 = vsub.f32 1.5, %v100
  %v102 = vmul.f32 %v97, %v101
  %vm103 = vweird.f32 %v75
  %vm104 = vweird.f32 %v97
  %vm105 = vmor %vm103, %vm104
  %v106 = vsel %vm105, %v97, %v102
  %v107 = vrsqrt.pop %v76
  %v108 = vmul.f32 %v107, %v76
  %v109 = vmul.f32 %v108, %v107
  %v110 = vmul.f32 0.5, %v109
  %v111 = vsub.f32 1.5, %v110
  %v112 = vmul.f32 %v107, %v111
  %vm113 = vweird.f32 %v76
  %vm114 = vweird.f32 %v107
  %vm115 = vmor %vm113, %vm114
  %v116 = vsel %vm115, %v107, %v112
  %v117 = vmul.f32 %v49, %v86
  %v118 = vmul.f32 %v50, %v96
  %v119 = vmul.f32 %v51, %v106
  %v120 = vmul.f32 %v52, %v116
  %v121 = vld [vmem:[%s1] sm:$0x1]
  %v123 = vperm.slane %v121, 0
  %v125 = vmul.f32 %v117, %v123
  %v126 = vmul.f32 %v118, %v123
  %v127 = vmul.f32 %v119, %v123
  %v128 = vmul.f32 %v120, %v123
  %v129 = vld [vmem:[%s2] sm:$0x1]
  %v131 = vperm.slane %v129, 0
  %v133 = vadd.f32 %v125, %v131
  %v134 = vadd.f32 %v126, %v131
  %v135 = vadd.f32 %v127, %v131
  %v136 = vadd.f32 %v128, %v131
  %v137 = vpack.c.bf16 %v134, %v133
  %v138 = vpack.c.bf16 %v136, %v135
  %v139 = vld [vmem:[%s3] sm:$0xff]
  %v140 = vld [vmem:[%s3 + $0x8] sm:$0xff]
  %v141 = vld [vmem:[%s3 + $0x10] sm:$0xff]
  %v142 = vld [vmem:[%s3 + $0x18] sm:$0xff]
  %v143 = vpack.c.bf16 %v140, %v139
  %v144 = vpack.c.bf16 %v142, %v141
  %v145 = vld [vmem:[%s4] sm:$0x1]
  %v147 = vperm.slane %v145, 0
  %v150 = vsel %vm25, %v137, 0
  %v153 = vsel %vm25, %v138, 0
  %155 = vmatpush.bf16.msra.mxu0 0
  %156 = vmatpush.bf16.msra.mxu0 0
  %157 = vmatpush.bf16.msra.mxu0 0
  %158 = vmatpush.bf16.msra.mxu0 0
  %159 = vmatpush.bf16.msra.mxu0 0
  %160 = vmatpush.bf16.msra.mxu0 0
  %161 = vmatpush.bf16.msra.mxu0 %v144
  %162 = vmatpush.bf16.msra.mxu0 %v143
  %163 = vmatmul.bf16.gmra.mxu0 %v150
  %v164 = vpop.f32.mrf.mxu0
  %v165 = vadd.f32 %v147, %v164
  %v166 = vpop.f32.mrf.mxu0
  %v167 = vadd.f32 %v147, %v166
  %168 = vmatmul.bf16.gmra.mxu0 %v153
  %v169 = vpop.f32.mrf.mxu0
  %v170 = vadd.f32 %v147, %v169
  %v171 = vpop.f32.mrf.mxu0
  %v172 = vadd.f32 %v147, %v171
  %173 = vdwg.mxu0
  %v174 = vmul.f32 %v165, %v165
  %v175 = vmul.f32 %v167, %v167
  %v176 = vmul.f32 %v170, %v170
  %v177 = vmul.f32 %v172, %v172
  %v178 = vmul.f32 %v165, %v174
  %v179 = vmul.f32 %v167, %v175
  %v180 = vmul.f32 %v170, %v176
  %v181 = vmul.f32 %v172, %v177
  %v182 = vmul.f32 %v178, 0.044715
  %v183 = vmul.f32 %v179, 0.044715
  %v184 = vmul.f32 %v180, 0.044715
  %v185 = vmul.f32 %v181, 0.044715
  %v186 = vadd.f32 %v165, %v182
  %v187 = vadd.f32 %v167, %v183
  %v188 = vadd.f32 %v170, %v184
  %v189 = vadd.f32 %v172, %v185
  %v190 = vmul.f32 %v186, 0.7978846
  %v191 = vmul.f32 %v187, 0.7978846
  %v192 = vmul.f32 %v188, 0.7978846
  %v193 = vmul.f32 %v189, 0.7978846
  %v194 = vtanh.pop %v190
  %v195 = vtanh.pop %v191
  %v196 = vtanh.pop %v192
  %v197 = vtanh.pop %v193
  %v198 = vadd.f32 %v194, 1.0
  %v199 = vadd.f32 %v195, 1.0
  %v200 = vadd.f32 %v196, 1.0
  %v201 = vadd.f32 %v197, 1.0
  %v202 = vmul.f32 %v198, 0.5
  %v203 = vmul.f32 %v199, 0.5
  %v204 = vmul.f32 %v200, 0.5
  %v205 = vmul.f32 %v201, 0.5
  %v206 = vmul.f32 %v165, %v202
  %v207 = vmul.f32 %v167, %v203
  %v208 = vmul.f32 %v170, %v204
  %v209 = vmul.f32 %v172, %v205
  %vm210 = vcmask 523264
  %211 = vst.msk [vmem:[%s5] sm:$0xff] %vm210, %v206
  %212 = vst.msk [vmem:[%s5 + $0x8] sm:$0xff] %vm210, %v207
  %213 = vst.msk [vmem:[%s5 + $0x10] sm:$0xff] %vm210, %v208
  %214 = vst.msk [vmem:[%s5 + $0x18] sm:$0xff] %vm210, %v209
  // Predicated region
  $region22: #{segmenter_forward.18} parent=0 // pred_check
    _
  $region23: #{segmenter_forward.18} parent=0 // pred_check_branch
    %216 = sbr.rel (0) target = $region25
  $region24: #{segmenter_forward.18} parent=0 // pred_region
    _
  $region25: #{segmenter_forward.18} parent=0 // pred_fallthru
    _
  // Predicated region
  $region26: #{segmenter_forward.18} parent=0 // pred_check
    _
  $region27: #{segmenter_forward.18} parent=0 // pred_check_branch
    %218 = sbr.rel (0) target = $region29
  $region28: #{segmenter_forward.18} parent=0 // pred_region
    _
  $region29: #{segmenter_forward.18} parent=0 // pred_fallthru
    _

// kernel: segmenter_forward.25
$region0: #{segmenter_forward.25}
  #allocation0 [shape = 'u32[]', space=smem, size = 0x4, offset = 0x4, fixed_abs, tag = 'smem constant byte address 0x4 - core index']
  #allocation1 [shape = 'u32[72,128]{1,0:T(1,128)}', space=vmem, size = 0x9000, scoped, tag = 'internal scratch']
  %s0 = inlined_call_operand.vmem [shape: f32[32,32], index: 0, kind: input, shape index: {}]
  %s1 = inlined_call_operand.vmem [shape: f32[1,32], index: 1, kind: input, shape index: {}]
  %s2 = inlined_call_operand.vmem [shape: f32[1,32], index: 2, kind: input, shape index: {}]
  %s3 = inlined_call_operand.vmem [shape: f32[32,128], index: 3, kind: input, shape index: {}]
  %s4 = inlined_call_operand.vmem [shape: f32[1,128], index: 4, kind: input, shape index: {}]
  %s5 = inlined_call_operand.vmem [shape: f32[32,128], index: 5, kind: output, shape index: {}]
  %s6 = sld [smem:[#allocation0]]
  $region30: #{segmenter_forward.25} parent=0
    _
  %s8 = ssub.s32 1, %s6
  %s9 = scalar_select 0, %s8, %s6
  // Predicated region
  $region2: #{segmenter_forward.25} parent=0 // pred_check
    _
  $region3: #{segmenter_forward.25} parent=0 // pred_check_branch
    %11 = sbr.rel (0) target = $region5
  $region4: #{segmenter_forward.25} parent=0 // pred_region
    _
  $region5: #{segmenter_forward.25} parent=0 // pred_fallthru
    _
  // Predicated region
  $region6: #{segmenter_forward.25} parent=0 // pred_check
    _
  $region7: #{segmenter_forward.25} parent=0 // pred_check_branch
    %13 = sbr.rel (0) target = $region9
  $region8: #{segmenter_forward.25} parent=0 // pred_region
    _
  $region9: #{segmenter_forward.25} parent=0 // pred_fallthru
    _
  // Predicated region
  $region10: #{segmenter_forward.25} parent=0 // pred_check
    _
  $region11: #{segmenter_forward.25} parent=0 // pred_check_branch
    %15 = sbr.rel (0) target = $region13
  $region12: #{segmenter_forward.25} parent=0 // pred_region
    _
  $region13: #{segmenter_forward.25} parent=0 // pred_fallthru
    _
  // Predicated region
  $region14: #{segmenter_forward.25} parent=0 // pred_check
    _
  $region15: #{segmenter_forward.25} parent=0 // pred_check_branch
    %17 = sbr.rel (0) target = $region17
  $region16: #{segmenter_forward.25} parent=0 // pred_region
    _
  $region17: #{segmenter_forward.25} parent=0 // pred_fallthru
    _
  // Predicated region
  $region18: #{segmenter_forward.25} parent=0 // pred_check
    _
  $region19: #{segmenter_forward.25} parent=0 // pred_check_branch
    %19 = sbr.rel (0) target = $region21
  $region20: #{segmenter_forward.25} parent=0 // pred_region
    _
  $region21: #{segmenter_forward.25} parent=0 // pred_fallthru
    _
  %v21 = vld [vmem:[%s0] sm:$0xff]
  %v22 = vld [vmem:[%s0 + $0x8] sm:$0xff]
  %v23 = vld [vmem:[%s0 + $0x10] sm:$0xff]
  %v24 = vld [vmem:[%s0 + $0x18] sm:$0xff]
  %vm25 = vcmask 261120
  %v26 = vsel %vm25, %v21, 0.0
  %27 = vadd.xlane.f32.xlu0 %v26
  %v28 = vpop.xlane.xlu0 %27
  %v29 = vsel %vm25, %v22, 0.0
  %30 = vadd.xlane.f32.xlu0 %v29
  %v31 = vpop.xlane.xlu0 %30
  %v32 = vsel %vm25, %v23, 0.0
  %33 = vadd.xlane.f32.xlu0 %v32
  %v34 = vpop.xlane.xlu0 %33
  %v35 = vsel %vm25, %v24, 0.0
  %36 = vadd.xlane.f32.xlu0 %v35
  %v37 = vpop.xlane.xlu0 %36
  %v38 = vrcp.pop 32.0
  %v39 = vmul.f32 32.0, %v38
  %v40 = vsub.f32 1.0, %v39
  %v41 = vmul.f32 %v38, %v40
  %v42 = vadd.f32 %v38, %v41
  %vm43 = vweird.f32 %v38
  %v44 = vsel %vm43, %v38, %v42
  %v45 = vmul.f32 %v28, %v44
  %v46 = vmul.f32 %v31, %v44
  %v47 = vmul.f32 %v34, %v44
  %v48 = vmul.f32 %v37, %v44
  %v49 = vsub.f32 %v21, %v45
  %v50 = vsub.f32 %v22, %v46
  %v51 = vsub.f32 %v23, %v47
  %v52 = vsub.f32 %v24, %v48
  %v53 = vmul.f32 %v49, %v49
  %v54 = vmul.f32 %v50, %v50
  %v55 = vmul.f32 %v51, %v51
  %v56 = vmul.f32 %v52, %v52
  %v57 = vsel %vm25, %v53, 0.0
  %58 = vadd.xlane.f32.xlu0 %v57
  %v59 = vpop.xlane.xlu0 %58
  %v60 = vsel %vm25, %v54, 0.0
  %61 = vadd.xlane.f32.xlu0 %v60
  %v62 = vpop.xlane.xlu0 %61
  %v63 = vsel %vm25, %v55, 0.0
  %64 = vadd.xlane.f32.xlu0 %v63
  %v65 = vpop.xlane.xlu0 %64
  %v66 = vsel %vm25, %v56, 0.0
  %67 = vadd.xlane.f32.xlu0 %v66
  %v68 = vpop.xlane.xlu0 %67
  %v69 = vmul.f32 %v59, %v44
  %v70 = vmul.f32 %v62, %v44
  %v71 = vmul.f32 %v65, %v44
  %v72 = vmul.f32 %v68, %v44
  %v73 = vadd.f32 %v69, 1e-05
  %v74 = vadd.f32 %v70, 1e-05
  %v75 = vadd.f32 %v71, 1e-05
  %v76 = vadd.f32 %v72, 1e-05
  %v77 = vrsqrt.pop %v73
  %v78 = vmul.f32 %v77, %v73
  %v79 = vmul.f32 %v78, %v77
  %v80 = vmul.f32 0.5, %v79
  %v81 = vsub.f32 1.5, %v80
  %v82 = vmul.f32 %v77, %v81
  %vm83 = vweird.f32 %v73
  %vm84 = vweird.f32 %v77
  %vm85 = vmor %vm83, %vm84
  %v86 = vsel %vm85, %v77, %v82
  %v87 = vrsqrt.pop %v74
  %v88 = vmul.f32 %v87, %v74
  %v89 = vmul.f32 %v88, %v87
  %v90 = vmul.f32 0.5, %v89
  %v91 = vsub.f32 1.5, %v90
  %v92 = vmul.f32 %v87, %v91
  %vm93 = vweird.f32 %v74
  %vm94 = vweird.f32 %v87
  %vm95 = vmor %vm93, %vm94
  %v96 = vsel %vm95, %v87, %v92
  %v97 = vrsqrt.pop %v75
  %v98 = vmul.f32 %v97, %v75
  %v99 = vmul.f32 %v98, %v97
  %v100 = vmul.f32 0.5, %v99
  %v101 = vsub.f32 1.5, %v100
  %v102 = vmul.f32 %v97, %v101
  %vm103 = vweird.f32 %v75
  %vm104 = vweird.f32 %v97
  %vm105 = vmor %vm103, %vm104
  %v106 = vsel %vm105, %v97, %v102
  %v107 = vrsqrt.pop %v76
  %v108 = vmul.f32 %v107, %v76
  %v109 = vmul.f32 %v108, %v107
  %v110 = vmul.f32 0.5, %v109
  %v111 = vsub.f32 1.5, %v110
  %v112 = vmul.f32 %v107, %v111
  %vm113 = vweird.f32 %v76
  %vm114 = vweird.f32 %v107
  %vm115 = vmor %vm113, %vm114
  %v116 = vsel %vm115, %v107, %v112
  %v117 = vmul.f32 %v49, %v86
  %v118 = vmul.f32 %v50, %v96
  %v119 = vmul.f32 %v51, %v106
  %v120 = vmul.f32 %v52, %v116
  %v121 = vld [vmem:[%s1] sm:$0x1]
  %v123 = vperm.slane %v121, 0
  %v125 = vmul.f32 %v117, %v123
  %v126 = vmul.f32 %v118, %v123
  %v127 = vmul.f32 %v119, %v123
  %v128 = vmul.f32 %v120, %v123
  %v129 = vld [vmem:[%s2] sm:$0x1]
  %v131 = vperm.slane %v129, 0
  %v133 = vadd.f32 %v125, %v131
  %v134 = vadd.f32 %v126, %v131
  %v135 = vadd.f32 %v127, %v131
  %v136 = vadd.f32 %v128, %v131
  %v137 = vpack.c.bf16 %v134, %v133
  %v138 = vpack.c.bf16 %v136, %v135
  %v139 = vld [vmem:[%s3] sm:$0xff]
  %v140 = vld [vmem:[%s3 + $0x8] sm:$0xff]
  %v141 = vld [vmem:[%s3 + $0x10] sm:$0xff]
  %v142 = vld [vmem:[%s3 + $0x18] sm:$0xff]
  %v143 = vpack.c.bf16 %v140, %v139
  %v144 = vpack.c.bf16 %v142, %v141
  %v145 = vld [vmem:[%s4] sm:$0x1]
  %v147 = vperm.slane %v145, 0
  %v150 = vsel %vm25, %v137, 0
  %v153 = vsel %vm25, %v138, 0
  %155 = vmatpush.bf16.msra.mxu0 0
  %156 = vmatpush.bf16.msra.mxu0 0
  %157 = vmatpush.bf16.msra.mxu0 0
  %158 = vmatpush.bf16.msra.mxu0 0
  %159 = vmatpush.bf16.msra.mxu0 0
  %160 = vmatpush.bf16.msra.mxu0 0
  %161 = vmatpush.bf16.msra.mxu0 %v144
  %162 = vmatpush.bf16.msra.mxu0 %v143
  %163 = vmatmul.bf16.gmra.mxu0 %v150
  %v164 = vpop.f32.mrf.mxu0
  %v165 = vadd.f32 %v147, %v164
  %v166 = vpop.f32.mrf.mxu0
  %v167 = vadd.f32 %v147, %v166
  %168 = vmatmul.bf16.gmra.mxu0 %v153
  %v169 = vpop.f32.mrf.mxu0
  %v170 = vadd.f32 %v147, %v169
  %v171 = vpop.f32.mrf.mxu0
  %v172 = vadd.f32 %v147, %v171
  %173 = vdwg.mxu0
  %174 = vst [vmem:[%s5] sm:$0xff] %v165
  %175 = vst [vmem:[%s5 + $0x8] sm:$0xff] %v167
  %176 = vst [vmem:[%s5 + $0x10] sm:$0xff] %v170
  %177 = vst [vmem:[%s5 + $0x18] sm:$0xff] %v172
  // Predicated region
  $region22: #{segmenter_forward.25} parent=0 // pred_check
    _
  $region23: #{segmenter_forward.25} parent=0 // pred_check_branch
    %179 = sbr.rel (0) target = $region25
  $region24: #{segmenter_forward.25} parent=0 // pred_region
    _
  $region25: #{segmenter_forward.25} parent=0 // pred_fallthru
    _
  // Predicated region
  $region26: #{segmenter_forward.25} parent=0 // pred_check
    _
  $region27: #{segmenter_forward.25} parent=0 // pred_check_branch
    %181 = sbr.rel (0) target = $region29
  $region28: #{segmenter_forward.25} parent=0 // pred_region
    _
  $region29: #{segmenter_forward.25} parent=0 // pred_fallthru
    _

// kernel: segmenter_forward.26
$region0: #{segmenter_forward.26}
  #allocation0 [shape = 'u32[]', space=smem, size = 0x4, offset = 0x4, fixed_abs, tag = 'smem constant byte address 0x4 - core index']
  #allocation1 [shape = 'u32[72,128]{1,0:T(1,128)}', space=vmem, size = 0x9000, scoped, tag = 'internal scratch']
  %s0 = inlined_call_operand.vmem [shape: f32[16,4], index: 0, kind: input, shape index: {}]
  %s1 = inlined_call_operand.vmem [shape: f32[4,40], index: 1, kind: input, shape index: {}]
  %s2 = inlined_call_operand.vmem [shape: f32[1,40], index: 2, kind: input, shape index: {}]
  %s3 = inlined_call_operand.vmem [shape: f32[16,40], index: 3, kind: output, shape index: {}]
  %s4 = sld [smem:[#allocation0]]
  $region22: #{segmenter_forward.26} parent=0
    _
  %s6 = ssub.s32 1, %s4
  %s7 = scalar_select 0, %s6, %s4
  // Predicated region
  $region2: #{segmenter_forward.26} parent=0 // pred_check
    _
  $region3: #{segmenter_forward.26} parent=0 // pred_check_branch
    %9 = sbr.rel (0) target = $region5
  $region4: #{segmenter_forward.26} parent=0 // pred_region
    _
  $region5: #{segmenter_forward.26} parent=0 // pred_fallthru
    _
  // Predicated region
  $region6: #{segmenter_forward.26} parent=0 // pred_check
    _
  $region7: #{segmenter_forward.26} parent=0 // pred_check_branch
    %11 = sbr.rel (0) target = $region9
  $region8: #{segmenter_forward.26} parent=0 // pred_region
    _
  $region9: #{segmenter_forward.26} parent=0 // pred_fallthru
    _
  // Predicated region
  $region10: #{segmenter_forward.26} parent=0 // pred_check
    _
  $region11: #{segmenter_forward.26} parent=0 // pred_check_branch
    %13 = sbr.rel (0) target = $region13
  $region12: #{segmenter_forward.26} parent=0 // pred_region
    _
  $region13: #{segmenter_forward.26} parent=0 // pred_fallthru
    _
  %v14 = vld [vmem:[%s0] sm:$0xff]
  %v15 = vld [vmem:[%s0 + $0x8] sm:$0xff]
  %v16 = vld [vmem:[%s1] sm:$0xf]
  %v17 = vld [vmem:[%s2] sm:$0x1]
  %v19 = vperm.slane %v17, 0
  %vm21 = vcmask 31744
  %v23 = vsel %vm21, %v14, 0
  %v26 = vsel %vm21, %v15, 0
  %vm28 = vcmask 1043456
  %v30 = vsel %vm28, %v16, 0
  %32 = vmatpush.msra.mxu0 0.0
  %33 = vmatpush.msra.mxu0 0.0
  %34 = vmatpush.msra.mxu0 0.0
  %35 = vmatpush.msra.mxu0 0.0
  %36 = vmatpush.msra.mxu0 0.0
  %37 = vmatpush.msra.mxu0 0.0
  %38 = vmatpush.msra.mxu0 0.0
  %39 = vmatpush.msra.mxu0 0.0
  %40 = vmatpush.msra.mxu0 0.0
  %41 = vmatpush.msra.mxu0 0.0
  %42 = vmatpush.msra.mxu0 0.0
  %43 = vmatpush.msra.mxu0 0.0
  %44 = vmatpush.msra.mxu0 0.0
  %45 = vmatpush.msra.mxu0 0.0
  %46 = vmatpush.msra.mxu0 0.0
  %47 = vmatpush.msra.mxu0 %v30
  %48 = vmatmul.f32.gmra.mxu0 %v23
  %v49 = vpop.f32.mrf.mxu0
  %v50 = vadd.f32 %v19, %v49
  %51 = vmatmul.f32.gmra.mxu0 %v26
  %v52 = vpop.f32.mrf.mxu0
  %v53 = vadd.f32 %v19, %v52
  %54 = vdwg.mxu0
  %vm55 = vcmask 326656
  %56 = vst.msk [vmem:[%s3] sm:$0xff] %vm55, %v50
  %57 = vst.msk [vmem:[%s3 + $0x8] sm:$0xff] %vm55, %v53
  // Predicated region
  $region14: #{segmenter_forward.26} parent=0 // pred_check
    _
  $region15: #{segmenter_forward.26} parent=0 // pred_check_branch
    %59 = sbr.rel (0) target = $region17
  $region16: #{segmenter_forward.26} parent=0 // pred_region
    _
  $region17: #{segmenter_forward.26} parent=0 // pred_fallthru
    _
  // Predicated region
  $region18: #{segmenter_forward.26} parent=0 // pred_check
    _
  $region19: #{segmenter_forward.26} parent=0 // pred_check_branch
    %61 = sbr.rel (0) target = $region21
  $region20: #{segmenter_forward.26} parent=0 // pred_region
    _
  $region21: #{segmenter_forward.26} parent=0 // pred_fallthru
    _

// kernel: segmenter_forward.27
$region0: #{segmenter_forward.27}
  #allocation0 [shape = 'u32[]', space=smem, size = 0x4, offset = 0x4, fixed_abs, tag = 'smem constant byte address 0x4 - core index']
  #allocation1 [shape = 'u32[72,128]{1,0:T(1,128)}', space=vmem, size = 0x9000, scoped, tag = 'internal scratch']
  %s0 = inlined_call_operand.vmem [shape: f32[160,4], index: 0, kind: input, shape index: {}]
  %s1 = inlined_call_operand.vmem [shape: f32[4,16], index: 1, kind: input, shape index: {}]
  %s2 = inlined_call_operand.vmem [shape: f32[1,16], index: 2, kind: input, shape index: {}]
  %s3 = inlined_call_operand.hbm [shape: f32[160,16], index: 3, kind: output, shape index: {}]
  %s4 = sld [smem:[#allocation0]]
  $region45: #{segmenter_forward.27} parent=0
    _
  %s6 = ssub.s32 1, %s4
  %s7 = scalar_select 0, %s6, %s4
  $region1: #{segmenter_forward.27} parent=0
    #allocation2 [shape = 'u8[32768]{0}', space=vmem, size = 0x8000, scoped, tag = 'output window, operand 0']
    #allocation3 [shape = 's32[2]{0}', space=sflag, size = 0x8, scoped, tag = 'scoped memory for segmenter_forward.27']
    %8 = vsyncpa [#allocation3], 0
    %s9 = scalar_lea.sflag [#allocation3], 1
    %10 = vsyncpa %s9, 0
    loop: start=0, step=1, limit=7
    $region2: #{segmenter_forward.27} parent=1 // loop_pre_header
      _
    $region3: #{segmenter_forward.27} parent=1 // loop_header
      %s12 = sphi 0, %s16
      %p13 = scmp.ge.s32.totalorder %s12, 7
      %s19 = sphi 0, %s38
      %s20 = sphi 0, %s34
      %s21 = sphi 0, %s30
      %s22 = sphi 0, %s19
      %s23 = sphi 0, %s20
      %s24 = sphi 0, %s21
      %s25 = sphi 0, %s22
      %s26 = sphi 0, %s23
      %s27 = sphi 0, %s24
      %s43 = sphi 0, %s45
      %s46 = sphi 0, %s43
      %s47 = sphi 0, %s46
      %s63 = sphi 0, %s47
      %s71 = sphi 0, %s73
      %s74 = sphi 0, %s71
      %s75 = sphi 0, %s74
      %s91 = sphi 0, %s75
      %s97 = sphi 0, %s99
      %s100 = sphi 0, %s97
      %s101 = sphi 0, %s100
      %s117 = sphi 0, %s101
      %s125 = sphi 0, %s127
      %s128 = sphi 0, %s125
      %s129 = sphi 0, %s128
      %s145 = sphi 0, %s129
    $region4: #{segmenter_forward.27} parent=1 // loop_header_branch
      %15 = sbr.rel (%p13) target = $region8
    $region5: #{segmenter_forward.27} parent=1 // loop_body
      %s17 = ssub.s32 %s12, 1
      %s18 = ssub.s32 %s12, 2
      %s28 = sadd.s32 1, %s21
      %p29 = scmp.ge.s32.totalorder %s28, 1
      %s30 = scalar_select %p29, 0, %s28
      %s31 = sadd.s32 1, %s20
      %s32 = scalar_select %p29, %s31, %s20
      %p33 = scmp.ge.s32.totalorder %s32, 1
      %s34 = scalar_select %p33, 0, %s32
      %s35 = sadd.s32 1, %s19
      %s36 = scalar_select %p33, %s35, %s19
      %p37 = scmp.ge.s32.totalorder %s36, 5
      %s38 = scalar_select %p37, 0, %s36
      %s39 = ssub.s32 %s19, %s38
      %s40 = ssub.s32 %s21, %s30
      %s41 = sor.u32 %s39, %s40
      %p42 = scmp.eq.s32.totalorder %s41, 0
      %s44 = sadd.s32 %s43, 1
      %s45 = scalar_select %p42, %s43, %s44
      %p48 = pneg %p42
      %p49 = scmp.eq.s32.totalorder %s12, 4
      %p50 = por %p48, %p49
      %p51 = scmp.ne.s32.totalorder %s43, %s46
      %p52 = scmp.eq.s32.totalorder %s12, 0
      %p53 = por %p51, %p52
      %p54 = scmp.ne.s32.totalorder %s43, %s46
      %p55 = scmp.eq.s32.totalorder %s17, 4
      %p56 = por %p54, %p55
      %p57 = scmp.ne.s32.totalorder %s46, %s47
      %p58 = scmp.eq.s32.totalorder %s17, 0
      %p59 = por %p57, %p58
      %p60 = scmp.ne.s32.totalorder %s46, %s47
      %p61 = scmp.eq.s32.totalorder %s18, 4
      %p62 = por %p60, %p61
      %p64 = scmp.ne.s32.totalorder %s47, %s63
      %p65 = scmp.eq.s32.totalorder %s18, 0
      %p66 = por %p64, %p65
      %s67 = ssub.s32 %s21, %s30
      %s68 = ssub.s32 %s20, %s34
      %s69 = sor.u32 %s67, %s68
      %p70 = scmp.eq.s32.totalorder %s69, 0
      %s72 = sadd.s32 %s71, 1
      %s73 = scalar_select %p70, %s71, %s72
      %p76 = pneg %p70
      %p77 = scmp.eq.s32.totalorder %s12, 4
      %p78 = por %p76, %p77
      %p79 = scmp.ne.s32.totalorder %s71, %s74
      %p80 = scmp.eq.s32.totalorder %s12, 0
      %p81 = por %p79, %p80
      %p82 = scmp.ne.s32.totalorder %s71, %s74
      %p83 = scmp.eq.s32.totalorder %s17, 4
      %p84 = por %p82, %p83
      %p85 = scmp.ne.s32.totalorder %s74, %s75
      %p86 = scmp.eq.s32.totalorder %s17, 0
      %p87 = por %p85, %p86
      %p88 = scmp.ne.s32.totalorder %s74, %s75
      %p89 = scmp.eq.s32.totalorder %s18, 4
      %p90 = por %p88, %p89
      %p92 = scmp.ne.s32.totalorder %s75, %s91
      %p93 = scmp.eq.s32.totalorder %s18, 0
      %p94 = por %p92, %p93
      %s95 = ssub.s32 %s20, %s34
      %p96 = scmp.eq.s32.totalorder %s95, 0
      %s98 = sadd.s32 %s97, 1
      %s99 = scalar_select %p96, %s97, %s98
      %p102 = pneg %p96
      %p103 = scmp.eq.s32.totalorder %s12, 4
      %p104 = por %p102, %p103
      %p105 = scmp.ne.s32.totalorder %s97, %s100
      %p106 = scmp.eq.s32.totalorder %s12, 0
      %p107 = por %p105, %p106
      %p108 = scmp.ne.s32.totalorder %s97, %s100
      %p109 = scmp.eq.s32.totalorder %s17, 4
      %p110 = por %p108, %p109
      %p111 = scmp.ne.s32.totalorder %s100, %s101
      %p112 = scmp.eq.s32.totalorder %s17, 0
      %p113 = por %p111, %p112
      %p114 = scmp.ne.s32.totalorder %s100, %s101
      %p115 = scmp.eq.s32.totalorder %s18, 4
      %p116 = por %p114, %p115
      %p118 = scmp.ne.s32.totalorder %s101, %s117
      %p119 = scmp.eq.s32.totalorder %s18, 0
      %p120 = por %p118, %p119
      %s121 = ssub.s32 %s19, %s38
      %s122 = ssub.s32 %s20, %s34
      %s123 = sor.u32 %s121, %s122
      %p124 = scmp.eq.s32.totalorder %s123, 0
      %s126 = sadd.s32 %s125, 1
      %s127 = scalar_select %p124, %s125, %s126
      %p130 = pneg %p124
      %p131 = scmp.eq.s32.totalorder %s12, 4
      %p132 = por %p130, %p131
      %p133 = scmp.ne.s32.totalorder %s125, %s128
      %p134 = scmp.eq.s32.totalorder %s12, 0
      %p135 = por %p133, %p134
      %p136 = scmp.ne.s32.totalorder %s125, %s128
      %p137 = scmp.eq.s32.totalorder %s17, 4
      %p138 = por %p136, %p137
      %p139 = scmp.ne.s32.totalorder %s128, %s129
      %p140 = scmp.eq.s32.totalorder %s17, 0
      %p141 = por %p139, %p140
      %p142 = scmp.ne.s32.totalorder %s128, %s129
      %p143 = scmp.eq.s32.totalorder %s18, 4
      %p144 = por %p142, %p143
      %p146 = scmp.ne.s32.totalorder %s129, %s145
      %p147 = scmp.eq.s32.totalorder %s18, 0
      %p148 = por %p146, %p147
      %p149 = scmp.le.s32.totalorder 1, %s12
      %p150 = scmp.lt.s32.totalorder %s12, 6
      %p151 = pnand %p149, %p150
      %p152 = pneg %p151
      // Predicated region
      $region9: #{segmenter_forward.27} parent=5 // pred_check
        _
      $region10: #{segmenter_forward.27} parent=5 // pred_check_branch
        %154 = sbr.rel (%p151) target = $region12
      $region11: #{segmenter_forward.27} parent=5 // pred_region
        %s155 = ssub.s32 %s12, 1
        // Predicated region
        $region13: #{segmenter_forward.27} parent=11 // pred_check
          %p156 = pneg %p87
        $region14: #{segmenter_forward.27} parent=11 // pred_check_branch
          %158 = sbr.rel (%p156) target = $region16
        $region15: #{segmenter_forward.27} parent=11 // pred_region
          %p159 = scmp.lt.s32.totalorder %s24, 0
          %s160 = scalar_select %p159, %s24, 0
          %p161 = scmp.lt.s32.totalorder %s23, 0
          %s162 = scalar_select %p161, %s23, 0
          %s163 = sadd.s32 %s162, %s160
          %s164 = smul.addr %s163, 4
          %s165 = scalar_lea.vmem %s1, %s164
        $region16: #{segmenter_forward.27} parent=11 // pred_fallthru
          _
        // Predicated region
        $region17: #{segmenter_forward.27} parent=11 // pred_check
          %p166 = pneg %p113
        $region18: #{segmenter_forward.27} parent=11 // pred_check_branch
          %168 = sbr.rel (%p166) target = $region20
        $region19: #{segmenter_forward.27} parent=11 // pred_region
          %p169 = scmp.lt.s32.totalorder %s23, 0
          %s170 = scalar_select %p169, %s23, 0
          %s171 = scalar_lea.vmem %s2, %s170
        $region20: #{segmenter_forward.27} parent=11 // pred_fallthru
          _
      $region12: #{segmenter_forward.27} parent=5 // pred_fallthru
        _
      %p172 = scmp.lt.s32.totalorder %s12, 5
      // Predicated region
      $region21: #{segmenter_forward.27} parent=5 // pred_check
        %p173 = pneg %p172
      $region22: #{segmenter_forward.27} parent=5 // pred_check_branch
        %175 = sbr.rel (%p173) target = $region24
      $region23: #{segmenter_forward.27} parent=5 // pred_region
        // Predicated region
        $region25: #{segmenter_forward.27} parent=23 // pred_check
          %p176 = pneg %p53
        $region26: #{segmenter_forward.27} parent=23 // pred_check_branch
          %178 = sbr.rel (%p176) target = $region28
        $region27: #{segmenter_forward.27} parent=23 // pred_region
          %s179 = smul.u32 4, %s19
          %p180 = scmp.lt.s32.totalorder %s179, 19
          %s181 = scalar_select %p180, %s179, 19
          %p182 = scmp.lt.s32.totalorder %s21, 0
          %s183 = scalar_select %p182, %s21, 0
          %s184 = sadd.s32 %s183, %s181
          %s185 = smul.addr %s184, 8
          %s186 = scalar_lea.vmem %s0, %s185
          %s187 = smul.u32 4, %s19
        $region28: #{segmenter_forward.27} parent=23 // pred_fallthru
          _
      $region24: #{segmenter_forward.27} parent=5 // pred_fallthru
        _
      %p188 = scmp.le.s32.totalorder 1, %s12
      %p189 = scmp.lt.s32.totalorder %s12, 6
      %p190 = pnand %p188, %p189
      %p191 = pneg %p190
      // Predicated region
      $region29: #{segmenter_forward.27} parent=5 // pred_check
        _
      $region30: #{segmenter_forward.27} parent=5 // pred_check_branch
        %193 = sbr.rel (%p190) target = $region32
      $region31: #{segmenter_forward.27} parent=5 // pred_region
        %s194 = ssub.s32 %s12, 1
        %s195 = smul.u32 4, %s22
        %p196 = scmp.lt.s32.totalorder %s195, 19
        %s197 = scalar_select %p196, %s195, 19
        %p198 = scmp.lt.s32.totalorder %s24, 0
        %s199 = scalar_select %p198, %s24, 0
        %s200 = sadd.s32 %s199, %s197
        %s201 = smul.addr %s200, 8
        %s202 = scalar_lea.vmem %s0, %s201
        %p203 = pneg %p59
        %p204 = pneg %p56
        %p205 = scmp.lt.s32.totalorder %s24, 0
        %s206 = scalar_select %p205, %s24, 0
        %p207 = scmp.lt.s32.totalorder %s23, 0
        %s208 = scalar_select %p207, %s23, 0
        %s209 = sadd.s32 %s208, %s206
        %s210 = smul.addr %s209, 4
        %s211 = scalar_lea.vmem %s1, %s210
        %p212 = pneg %p87
        %p213 = pneg %p84
        %p214 = scmp.lt.s32.totalorder %s23, 0
        %s215 = scalar_select %p214, %s23, 0
        %s216 = scalar_lea.vmem %s2, %s215
        %p217 = pneg %p113
        %p218 = pneg %p110
        %p219 = pneg %p141
        %p220 = pneg %p138
        %s221 = sand.u32 %s128, 1
        %s222 = scalar_lea.sflag [#allocation3], %s221
        %s223 = sand.u32 %s128, 1
        %s224 = smul.addr %s223, 32
        %s225 = scalar_lea.vmem [#allocation2], %s224
        %s226 = smul.u32 4, %s22
        %p227 = scmp.lt.s32.totalorder %s226, 19
        %s228 = scalar_select %p227, %s226, 19
        %p229 = scmp.lt.s32.totalorder %s24, 0
        %s230 = scalar_select %p229, %s24, 0
        %s231 = sadd.s32 %s230, %s228
        %s232 = smul.addr %s231, 8
        %s233 = scalar_lea.vmem %s0, %s232
        %s234 = smul.u32 4, %s22
        %p235 = scmp.lt.s32.totalorder %s24, 0
        %s236 = scalar_select %p235, %s24, 0
        %p237 = scmp.lt.s32.totalorder %s23, 0
        %s238 = scalar_select %p237, %s23, 0
        %s239 = sadd.s32 %s238, %s236
        %s240 = smul.addr %s239, 4
        %s241 = scalar_lea.vmem %s1, %s240
        %p242 = scmp.lt.s32.totalorder %s23, 0
        %s243 = scalar_select %p242, %s23, 0
        %s244 = scalar_lea.vmem %s2, %s243
        %s245 = smul.u32 4, %s22
        %v246 = vld [vmem:[%s233] sm:$0xff]
        %v247 = vld [vmem:[%s233 + $0x8] sm:$0xff]
        %v248 = vld [vmem:[%s233 + $0x10] sm:$0xff]
        %v249 = vld [vmem:[%s233 + $0x18] sm:$0xff]
        %v250 = vld [vmem:[%s241] sm:$0xf]
        %v251 = vld [vmem:[%s244] sm:$0x1]
        %v253 = vperm.slane %v251, 0
        %vm255 = vcmask 31744
        %v257 = vsel %vm255, %v246, 0
        %v260 = vsel %vm255, %v247, 0
        %v263 = vsel %vm255, %v248, 0
        %v266 = vsel %vm255, %v249, 0
        %vm268 = vcmask 1043456
        %v270 = vsel %vm268, %v250, 0
        %272 = vmatpush.msra.mxu0 0.0
        %273 = vmatpush.msra.mxu0 0.0
        %274 = vmatpush.msra.mxu0 0.0
        %275 = vmatpush.msra.mxu0 0.0
        %276 = vmatpush.msra.mxu0 0.0
        %277 = vmatpush.msra.mxu0 0.0
        %278 = vmatpush.msra.mxu0 0.0
        %279 = vmatpush.msra.mxu0 0.0
        %280 = vmatpush.msra.mxu0 0.0
        %281 = vmatpush.msra.mxu0 0.0
        %282 = vmatpush.msra.mxu0 0.0
        %283 = vmatpush.msra.mxu0 0.0
        %284 = vmatpush.msra.mxu0 0.0
        %285 = vmatpush.msra.mxu0 0.0
        %286 = vmatpush.msra.mxu0 0.0
        %287 = vmatpush.msra.mxu0 %v270
        %288 = vmatmul.f32.gmra.mxu0 %v257
        %v289 = vpop.f32.mrf.mxu0
        %v290 = vadd.f32 %v253, %v289
        %291 = vmatmul.f32.gmra.mxu0 %v260
        %v292 = vpop.f32.mrf.mxu0
        %v293 = vadd.f32 %v253, %v292
        %294 = vmatmul.f32.gmra.mxu0 %v263
        %v295 = vpop.f32.mrf.mxu0
        %v296 = vadd.f32 %v253, %v295
        %297 = vmatmul.f32.gmra.mxu0 %v266
        %v298 = vpop.f32.mrf.mxu0
        %v299 = vadd.f32 %v253, %v298
        %300 = vdwg.mxu0
        %vm301 = vcmask 130048
        %302 = vst.msk [vmem:[%s225] sm:$0xff] %vm301, %v290
        %303 = vst.msk [vmem:[%s225 + $0x8] sm:$0xff] %vm301, %v293
        %304 = vst.msk [vmem:[%s225 + $0x10] sm:$0xff] %vm301, %v296
        %305 = vst.msk [vmem:[%s225 + $0x18] sm:$0xff] %vm301, %v299
        %s306 = sand.u32 %s128, 1
        %s307 = scalar_lea.sflag [#allocation3], %s306
        %s308 = sand.u32 %s128, 1
        %s309 = smul.addr %s308, 32
        %s310 = scalar_lea.vmem [#allocation2], %s309
        // Predicated region
        $region33: #{segmenter_forward.27} parent=31 // pred_check
          %p311 = pneg %p138
        $region34: #{segmenter_forward.27} parent=31 // pred_check_branch
          %313 = sbr.rel (%p311) target = $region36
        $region35: #{segmenter_forward.27} parent=31 // pred_region
          %s314 = smul.u32 4, %s22
          %316 = vsyncadd %s307, 0
          %s317 = sadd.s32 %s23, %s314
          %s318 = smul.addr %s317, 8
          %s319 = scalar_lea.hbm %s3, %s318
          %s320 = sshll.u32 %s310, 4
          %s321 = int_to_ptr.vmem [resolvable:$true] %s320
          %s322 = sshll.u32 %s319, 4
          %s323 = int_to_ptr.hbm [resolvable:$true] %s322
          %328 = dma.vmem_to_hbm [thread:$0]  %s321, 512, %s323, %s307, 128, 128, 8
        $region36: #{segmenter_forward.27} parent=31 // pred_fallthru
          _
      $region32: #{segmenter_forward.27} parent=5 // pred_fallthru
        _
      %p329 = scmp.le.s32.totalorder 2, %s12
      // Predicated region
      $region37: #{segmenter_forward.27} parent=5 // pred_check
        %p330 = pneg %p329
      $region38: #{segmenter_forward.27} parent=5 // pred_check_branch
        %332 = sbr.rel (%p330) target = $region40
      $region39: #{segmenter_forward.27} parent=5 // pred_region
        %s333 = ssub.s32 %s12, 2
        // Predicated region
        $region41: #{segmenter_forward.27} parent=39 // pred_check
          %p334 = pneg %p144
        $region42: #{segmenter_forward.27} parent=39 // pred_check_branch
          %336 = sbr.rel (%p334) target = $region44
        $region43: #{segmenter_forward.27} parent=39 // pred_region
          %s337 = sand.u32 %s129, 1
          %s338 = scalar_lea.sflag [#allocation3], %s337
          %s339 = sand.u32 %s129, 1
          %s340 = smul.addr %s339, 32
          %s341 = scalar_lea.vmem [#allocation2], %s340
          %343 = dma.done %s338, 512
        $region44: #{segmenter_forward.27} parent=39 // pred_fallthru
          _
      $region40: #{segmenter_forward.27} parent=5 // pred_fallthru
        _
    $region6: #{segmenter_forward.27} parent=1 // loop_footer
      %s16 = sadd.s32 1, %s12
    $region7: #{segmenter_forward.27} parent=1 // loop_footer_branch
      %11 = sbr.rel target = $region3
    $region8: #{segmenter_forward.27} parent=1 // loop_exit
      _
    %344 = vsyncpa [#allocation3], 1
    %s345 = scalar_lea.sflag [#allocation3], 1
    %346 = vsyncpa %s345, 1

</llo_original>
